<compile_context>
chip_gen: v7x
topology: tpu7x:2x2x1
jax: 0.10.0
libtpu: 0.0.40
codegen_flags: <defaults>
</compile_context>

<pallas_src>
import jax
import jax.numpy as jnp
from jax import lax
from jax.experimental import pallas as pl
from jax.experimental.pallas import tpu as pltpu


BATCH_TILE = 8  # sublane-aligned batch tile


# ----------------------------------------------------------------------------
# Fused kernel: encoder pool + pooler, projection head, regression head
# ----------------------------------------------------------------------------
def fused_regression_kernel(
    ids_ref, mask_ref, embed_ref,
    enc_w_ref, enc_b_ref,
    p_w1_ref, p_b1_ref, p_w2_ref, p_b2_ref, ln_g_ref, ln_b_ref,
    r_w1_ref, r_b1_ref, r_w2_ref, r_b2_ref,
    out_ref,
):
    ids = ids_ref[...]                                    # (TB, S) int32
    mask = mask_ref[...]                                  # (TB, S) f32
    TB, S = ids.shape
    V = embed_ref.shape[0]

    # ---- TextEncoder: in-kernel embedding gather + masked mean pool.
    # pooled[b] = (sum_s mask[b,s] * embed[ids[b,s]]) / sum_s mask[b,s]
    # expressed as (mask-weighted one-hot counts) @ embed -> MXU contraction,
    # so the (B, S, H) gathered tensor never exists in HBM.
    onehot = ids[:, :, None] == lax.broadcasted_iota(jnp.int32, (TB, S, V), 2)
    wcounts = jnp.sum(jnp.where(onehot, mask[:, :, None], 0.0), axis=1)   # (TB, V)
    pooled = jnp.dot(wcounts, embed_ref[...],
                     preferred_element_type=jnp.float32)                  # (TB, H)
    denom = jnp.maximum(jnp.sum(mask, axis=-1, keepdims=True), 1.0)       # (TB, 1)
    pooled = pooled * pl.reciprocal(denom, approx=True)

    # pooler: Linear + tanh (bf16 MXU operands, f32 accumulate)
    x = jnp.tanh(
        jnp.dot(pooled.astype(jnp.bfloat16), enc_w_ref[...],
                preferred_element_type=jnp.float32) + enc_b_ref[...])     # (TB, E)

    # ---- ProjectionHead: Linear -> GELU -> Linear -> (dropout=id) -> residual -> LayerNorm
    projected = jnp.dot(x.astype(jnp.bfloat16), p_w1_ref[...],
                        preferred_element_type=jnp.float32) + p_b1_ref[...]
    # TODO(synk): PyTorch nn.GELU defaults to exact erf GELU; the tanh approximation
    # is used here for a guaranteed Mosaic lowering.
    g = jax.nn.gelu(projected, approximate=True)
    h = jnp.dot(g.astype(jnp.bfloat16), p_w2_ref[...],
                preferred_element_type=jnp.float32) + p_b2_ref[...]
    h = h + projected
    mu = jnp.mean(h, axis=-1, keepdims=True)
    var = jnp.mean(jnp.square(h - mu), axis=-1, keepdims=True)
    y = (h - mu) * lax.rsqrt(var + 1e-5)
    y = y * ln_g_ref[...] + ln_b_ref[...]                                 # (TB, P)

    # ---- RegressionHead: Linear -> ReLU -> Linear(-> 1)
    r = jnp.dot(y.astype(jnp.bfloat16), r_w1_ref[...],
                preferred_element_type=jnp.float32) + r_b1_ref[...]
    r = jnp.maximum(r, 0.0)                                               # (TB, R)
    # final (R -> 1) projection as a VPU lane reduction (avoids a 1-wide MXU tile)
    out_ref[...] = jnp.sum(r * r_w2_ref[...], axis=-1, keepdims=True) + r_b2_ref[...]


# ----------------------------------------------------------------------------
# pallas_call wrapper: batch-gridded, weights replicated (fetched once)
# ----------------------------------------------------------------------------
def _replicated(shape):
    return pl.BlockSpec(shape, lambda i, _s=shape: (0,) * len(_s))


@jax.jit
def regression_model_forward(params, input_ids, attention_mask):
    B, S = input_ids.shape
    TB = BATCH_TILE
    Bp = ((B + TB - 1) // TB) * TB
    pad = Bp - B
    ids = jnp.pad(input_ids.astype(jnp.int32), ((0, pad), (0, 0)))
    mask = jnp.pad(attention_mask.astype(jnp.float32), ((0, pad), (0, 0)))

    weights = (
        params["embed"],
        params["enc_w"], params["enc_b"],
        params["proj_w1"], params["proj_b1"],
        params["proj_w2"], params["proj_b2"],
        params["ln_gamma"], params["ln_beta"],
        params["reg_w1"], params["reg_b1"],
        params["reg_w2"], params["reg_b2"],
    )

    out = pl.pallas_call(
        fused_regression_kernel,
        out_shape=jax.ShapeDtypeStruct((Bp, 1), jnp.float32),
        grid=(Bp // TB,),
        in_specs=[
            pl.BlockSpec((TB, S), lambda i: (i, 0)),   # token ids (batch tiled)
            pl.BlockSpec((TB, S), lambda i: (i, 0)),   # attention mask (batch tiled)
        ] + [_replicated(w.shape) for w in weights],
        out_specs=pl.BlockSpec((TB, 1), lambda i: (i, 0)),
        compiler_params=pltpu.CompilerParams(
            dimension_semantics=("parallel",),
            vmem_limit_bytes=32 * 1024 * 1024,
        ),
    )(ids, mask, *weights)
    return out[:B]


# ----------------------------------------------------------------------------
# Parameter init (deterministic; RegressionHead is xavier_uniform / zero bias)
# ----------------------------------------------------------------------------
def xavier_uniform(key, shape, fan_in, fan_out):
    bound = float((6.0 / (fan_in + fan_out)) ** 0.5)
    return jax.random.uniform(key, shape, jnp.float32, -bound, bound)


def init_params(key, vocab, hidden, emb_dim, proj_dim, reg_hidden):
    ks = jax.random.split(key, 8)
    bf16 = jnp.bfloat16
    return {
        # TextEncoder (embed table f32; pooler weight bf16 for the MXU)
        "embed": jax.random.normal(ks[0], (vocab, hidden), jnp.float32) * 0.02,
        "enc_w": (jax.random.normal(ks[1], (hidden, emb_dim), jnp.float32) * 0.02).astype(bf16),
        "enc_b": jnp.zeros((1, emb_dim), jnp.float32),
        # ProjectionHead
        "proj_w1": (jax.random.normal(ks[2], (emb_dim, proj_dim), jnp.float32) * 0.02).astype(bf16),
        "proj_b1": jnp.zeros((1, proj_dim), jnp.float32),
        "proj_w2": (jax.random.normal(ks[3], (proj_dim, proj_dim), jnp.float32) * 0.02).astype(bf16),
        "proj_b2": jnp.zeros((1, proj_dim), jnp.float32),
        "ln_gamma": jnp.ones((1, proj_dim), jnp.float32),
        "ln_beta": jnp.zeros((1, proj_dim), jnp.float32),
        # RegressionHead: xavier_uniform weights, zero bias
        "reg_w1": xavier_uniform(ks[4], (proj_dim, reg_hidden), proj_dim, reg_hidden).astype(bf16),
        "reg_b1": jnp.zeros((1, reg_hidden), jnp.float32),
        # stored as a (1, R) row so the final matmul is a lane-wise reduce
        "reg_w2": xavier_uniform(ks[5], (1, reg_hidden), reg_hidden, 1),
        "reg_b2": jnp.zeros((1, 1), jnp.float32),
    }


if __name__ == "__main__":
    # small, but lane-dense (128-wide features) and batch-tileable (TB = 8)
    B, S = 16, 16
    VOCAB, HIDDEN, EMB, PROJ, REG_H = 128, 128, 128, 128, 128

    key = jax.random.PRNGKey(0)
    k_param, k_ids, k_len = jax.random.split(key, 3)

    params = init_params(k_param, VOCAB, HIDDEN, EMB, PROJ, REG_H)

    input_ids = jax.random.randint(k_ids, (B, S), 0, VOCAB, dtype=jnp.int32)
    lengths = jax.random.randint(k_len, (B,), 1, S + 1)
    attention_mask = (jnp.arange(S)[None, :] < lengths[:, None]).astype(jnp.float32)

    out = regression_model_forward(params, input_ids, attention_mask)
    out = jax.block_until_ready(out)
    assert out.shape == (B, 1) and out.dtype == jnp.float32
    assert bool(jnp.all(jnp.isfinite(out)))
    print("KERNEL_OK")
</pallas_src>

<mosaic_0001>
module attributes {stable_mosaic.version = 11 : i64} {
  func.func @fused_regression_kernel(%arg0: i32, %arg1: memref<8x16xi32, #tpu.memory_space<vmem>>, %arg2: memref<8x16xf32, #tpu.memory_space<vmem>>, %arg3: memref<128x128xf32, #tpu.memory_space<vmem>>, %arg4: memref<128x128xbf16, #tpu.memory_space<vmem>>, %arg5: memref<1x128xf32, #tpu.memory_space<vmem>>, %arg6: memref<128x128xbf16, #tpu.memory_space<vmem>>, %arg7: memref<1x128xf32, #tpu.memory_space<vmem>>, %arg8: memref<128x128xbf16, #tpu.memory_space<vmem>>, %arg9: memref<1x128xf32, #tpu.memory_space<vmem>>, %arg10: memref<1x128xf32, #tpu.memory_space<vmem>>, %arg11: memref<1x128xf32, #tpu.memory_space<vmem>>, %arg12: memref<128x128xbf16, #tpu.memory_space<vmem>>, %arg13: memref<1x128xf32, #tpu.memory_space<vmem>>, %arg14: memref<1x128xf32, #tpu.memory_space<vmem>>, %arg15: memref<1x1xf32, #tpu.memory_space<vmem>>, %arg16: memref<8x1xf32, #tpu.memory_space<vmem>>) attributes {dimension_semantics = [#tpu.dimension_semantics<parallel>], iteration_bounds = array<i64: 2>, scalar_prefetch = 0 : i64, scratch_operands = 0 : i64, tpu.core_type = #tpu.core_type<tc>, window_params = [{transform_indices = @transform_0, window_bounds = array<i64: 8, 16>}, {transform_indices = @transform_1, window_bounds = array<i64: 8, 16>}, {pipeline_mode = #tpu.pipeline_mode<synchronous>, transform_indices = @transform_2, window_bounds = array<i64: 128, 128>}, {pipeline_mode = #tpu.pipeline_mode<synchronous>, transform_indices = @transform_3, window_bounds = array<i64: 128, 128>}, {pipeline_mode = #tpu.pipeline_mode<synchronous>, transform_indices = @transform_4, window_bounds = array<i64: 1, 128>}, {pipeline_mode = #tpu.pipeline_mode<synchronous>, transform_indices = @transform_5, window_bounds = array<i64: 128, 128>}, {pipeline_mode = #tpu.pipeline_mode<synchronous>, transform_indices = @transform_6, window_bounds = array<i64: 1, 128>}, {pipeline_mode = #tpu.pipeline_mode<synchronous>, transform_indices = @transform_7, window_bounds = array<i64: 128, 128>}, {pipeline_mode = #tpu.pipeline_mode<synchronous>, transform_indices = @transform_8, window_bounds = array<i64: 1, 128>}, {pipeline_mode = #tpu.pipeline_mode<synchronous>, transform_indices = @transform_9, window_bounds = array<i64: 1, 128>}, {pipeline_mode = #tpu.pipeline_mode<synchronous>, transform_indices = @transform_10, window_bounds = array<i64: 1, 128>}, {pipeline_mode = #tpu.pipeline_mode<synchronous>, transform_indices = @transform_11, window_bounds = array<i64: 128, 128>}, {pipeline_mode = #tpu.pipeline_mode<synchronous>, transform_indices = @transform_12, window_bounds = array<i64: 1, 128>}, {pipeline_mode = #tpu.pipeline_mode<synchronous>, transform_indices = @transform_13, window_bounds = array<i64: 1, 128>}, {pipeline_mode = #tpu.pipeline_mode<synchronous>, transform_indices = @transform_14, window_bounds = array<i64: 1, 1>}, {transform_indices = @transform_15, window_bounds = array<i64: 8, 1>}]} {
    %c0 = arith.constant 0 : index
    %c0_0 = arith.constant 0 : index
    %0 = vector.load %arg1[%c0, %c0_0] : memref<8x16xi32, #tpu.memory_space<vmem>>, vector<8x16xi32>
    %c0_1 = arith.constant 0 : index
    %c0_2 = arith.constant 0 : index
    %1 = vector.load %arg2[%c0_1, %c0_2] : memref<8x16xf32, #tpu.memory_space<vmem>>, vector<8x16xf32>
    %2 = vector.shape_cast %0 : vector<8x16xi32> to vector<8x16x1xi32>
    %3 = tpu.iota {dimensions = array<i32: 2>} : vector<8x16x128xi32>
    %4 = vector.broadcast %2 : vector<8x16x1xi32> to vector<8x16x128xi32>
    %5 = arith.cmpi eq, %4, %3 : vector<8x16x128xi32>
    %6 = vector.shape_cast %1 : vector<8x16xf32> to vector<8x16x1xf32>
    %cst = arith.constant 0.000000e+00 : f32
    %7 = vector.shape_cast %6 : vector<8x16x1xf32> to vector<8x16x1xf32>
    %8 = vector.broadcast %7 : vector<8x16x1xf32> to vector<8x16x128xf32>
    %9 = vector.broadcast %cst : f32 to vector<8x16x128xf32>
    %10 = arith.select %5, %8, %9 : vector<8x16x128xi1>, vector<8x16x128xf32>
    %cst_3 = arith.constant dense<0.000000e+00> : vector<8x128xf32>
    %11 = vector.multi_reduction <add>, %10, %cst_3 [1] : vector<8x16x128xf32> to vector<8x128xf32>
    %c0_4 = arith.constant 0 : index
    %c0_5 = arith.constant 0 : index
    %12 = vector.load %arg3[%c0_4, %c0_5] : memref<128x128xf32, #tpu.memory_space<vmem>>, vector<128x128xf32>
    %cst_6 = arith.constant dense<0.000000e+00> : vector<8x128xf32>
    %13 = tpu.matmul %11, %12, %cst_6 {dimension_numbers = #tpu.dot_dimension_numbers<[1], [0], [0], [1], [0, 0, 1, 1], [], []>} : vector<8x128xf32>, vector<128x128xf32>, vector<8x128xf32> -> vector<8x128xf32>
    %cst_7 = arith.constant dense<0.000000e+00> : vector<8xf32>
    %14 = vector.multi_reduction <add>, %1, %cst_7 [1] : vector<8x16xf32> to vector<8xf32>
    %15 = vector.shape_cast %14 : vector<8xf32> to vector<8x1xf32>
    %cst_8 = arith.constant 1.000000e+00 : f32
    %16 = vector.broadcast %cst_8 : f32 to vector<8x1xf32>
    %17 = arith.maximumf %15, %16 : vector<8x1xf32>
    %18 = tpu.reciprocal %17 {approx = true} : vector<8x1xf32> -> vector<8x1xf32>
    %19 = vector.broadcast %18 : vector<8x1xf32> to vector<8x128xf32>
    %20 = arith.mulf %13, %19 : vector<8x128xf32>
    %21 = arith.truncf %20 : vector<8x128xf32> to vector<8x128xbf16>
    %c0_9 = arith.constant 0 : index
    %c0_10 = arith.constant 0 : index
    %22 = vector.load %arg4[%c0_9, %c0_10] : memref<128x128xbf16, #tpu.memory_space<vmem>>, vector<128x128xbf16>
    %cst_11 = arith.constant dense<0.000000e+00> : vector<8x128xf32>
    %23 = tpu.matmul %21, %22, %cst_11 {dimension_numbers = #tpu.dot_dimension_numbers<[1], [0], [0], [1], [0, 0, 1, 1], [], []>} : vector<8x128xbf16>, vector<128x128xbf16>, vector<8x128xf32> -> vector<8x128xf32>
    %c0_12 = arith.constant 0 : index
    %c0_13 = arith.constant 0 : index
    %24 = vector.load %arg5[%c0_12, %c0_13] : memref<1x128xf32, #tpu.memory_space<vmem>>, vector<1x128xf32>
    %25 = vector.broadcast %24 : vector<1x128xf32> to vector<8x128xf32>
    %26 = arith.addf %23, %25 : vector<8x128xf32>
    %27 = math.tanh %26 : vector<8x128xf32>
    %28 = arith.truncf %27 : vector<8x128xf32> to vector<8x128xbf16>
    %c0_14 = arith.constant 0 : index
    %c0_15 = arith.constant 0 : index
    %29 = vector.load %arg6[%c0_14, %c0_15] : memref<128x128xbf16, #tpu.memory_space<vmem>>, vector<128x128xbf16>
    %cst_16 = arith.constant dense<0.000000e+00> : vector<8x128xf32>
    %30 = tpu.matmul %28, %29, %cst_16 {dimension_numbers = #tpu.dot_dimension_numbers<[1], [0], [0], [1], [0, 0, 1, 1], [], []>} : vector<8x128xbf16>, vector<128x128xbf16>, vector<8x128xf32> -> vector<8x128xf32>
    %c0_17 = arith.constant 0 : index
    %c0_18 = arith.constant 0 : index
    %31 = vector.load %arg7[%c0_17, %c0_18] : memref<1x128xf32, #tpu.memory_space<vmem>>, vector<1x128xf32>
    %32 = vector.broadcast %31 : vector<1x128xf32> to vector<8x128xf32>
    %33 = arith.addf %30, %32 : vector<8x128xf32>
    %34 = arith.mulf %33, %33 : vector<8x128xf32>
    %35 = arith.mulf %33, %34 : vector<8x128xf32>
    %cst_19 = arith.constant 4.471500e-02 : f32
    %36 = vector.broadcast %cst_19 : f32 to vector<8x128xf32>
    %37 = arith.mulf %36, %35 : vector<8x128xf32>
    %38 = arith.addf %33, %37 : vector<8x128xf32>
    %cst_20 = arith.constant 0.797884583 : f32
    %39 = vector.broadcast %cst_20 : f32 to vector<8x128xf32>
    %40 = arith.mulf %39, %38 : vector<8x128xf32>
    %41 = math.tanh %40 : vector<8x128xf32>
    %cst_21 = arith.constant 1.000000e+00 : f32
    %42 = vector.broadcast %cst_21 : f32 to vector<8x128xf32>
    %43 = arith.addf %42, %41 : vector<8x128xf32>
    %cst_22 = arith.constant 5.000000e-01 : f32
    %44 = vector.broadcast %cst_22 : f32 to vector<8x128xf32>
    %45 = arith.mulf %44, %43 : vector<8x128xf32>
    %46 = arith.mulf %33, %45 : vector<8x128xf32>
    %47 = arith.truncf %46 : vector<8x128xf32> to vector<8x128xbf16>
    %c0_23 = arith.constant 0 : index
    %c0_24 = arith.constant 0 : index
    %48 = vector.load %arg8[%c0_23, %c0_24] : memref<128x128xbf16, #tpu.memory_space<vmem>>, vector<128x128xbf16>
    %cst_25 = arith.constant dense<0.000000e+00> : vector<8x128xf32>
    %49 = tpu.matmul %47, %48, %cst_25 {dimension_numbers = #tpu.dot_dimension_numbers<[1], [0], [0], [1], [0, 0, 1, 1], [], []>} : vector<8x128xbf16>, vector<128x128xbf16>, vector<8x128xf32> -> vector<8x128xf32>
    %c0_26 = arith.constant 0 : index
    %c0_27 = arith.constant 0 : index
    %50 = vector.load %arg9[%c0_26, %c0_27] : memref<1x128xf32, #tpu.memory_space<vmem>>, vector<1x128xf32>
    %51 = vector.broadcast %50 : vector<1x128xf32> to vector<8x128xf32>
    %52 = arith.addf %49, %51 : vector<8x128xf32>
    %53 = arith.addf %52, %33 : vector<8x128xf32>
    %cst_28 = arith.constant dense<0.000000e+00> : vector<8xf32>
    %54 = vector.multi_reduction <add>, %53, %cst_28 [1] : vector<8x128xf32> to vector<8xf32>
    %55 = vector.shape_cast %54 : vector<8xf32> to vector<8x1xf32>
    %cst_29 = arith.constant 1.280000e+02 : f32
    %56 = vector.broadcast %cst_29 : f32 to vector<8x1xf32>
    %57 = arith.divf %55, %56 : vector<8x1xf32>
    %58 = vector.broadcast %57 : vector<8x1xf32> to vector<8x128xf32>
    %59 = arith.subf %53, %58 : vector<8x128xf32>
    %60 = arith.mulf %59, %59 : vector<8x128xf32>
    %cst_30 = arith.constant dense<0.000000e+00> : vector<8xf32>
    %61 = vector.multi_reduction <add>, %60, %cst_30 [1] : vector<8x128xf32> to vector<8xf32>
    %62 = vector.shape_cast %61 : vector<8xf32> to vector<8x1xf32>
    %cst_31 = arith.constant 1.280000e+02 : f32
    %63 = vector.broadcast %cst_31 : f32 to vector<8x1xf32>
    %64 = arith.divf %62, %63 : vector<8x1xf32>
    %65 = vector.broadcast %57 : vector<8x1xf32> to vector<8x128xf32>
    %66 = arith.subf %53, %65 : vector<8x128xf32>
    %cst_32 = arith.constant 9.99999974E-6 : f32
    %67 = vector.broadcast %cst_32 : f32 to vector<8x1xf32>
    %68 = arith.addf %64, %67 : vector<8x1xf32>
    %69 = math.rsqrt %68 : vector<8x1xf32>
    %70 = vector.broadcast %69 : vector<8x1xf32> to vector<8x128xf32>
    %71 = arith.mulf %66, %70 : vector<8x128xf32>
    %c0_33 = arith.constant 0 : index
    %c0_34 = arith.constant 0 : index
    %72 = vector.load %arg10[%c0_33, %c0_34] : memref<1x128xf32, #tpu.memory_space<vmem>>, vector<1x128xf32>
    %73 = vector.broadcast %72 : vector<1x128xf32> to vector<8x128xf32>
    %74 = arith.mulf %71, %73 : vector<8x128xf32>
    %c0_35 = arith.constant 0 : index
    %c0_36 = arith.constant 0 : index
    %75 = vector.load %arg11[%c0_35, %c0_36] : memref<1x128xf32, #tpu.memory_space<vmem>>, vector<1x128xf32>
    %76 = vector.broadcast %75 : vector<1x128xf32> to vector<8x128xf32>
    %77 = arith.addf %74, %76 : vector<8x128xf32>
    %78 = arith.truncf %77 : vector<8x128xf32> to vector<8x128xbf16>
    %c0_37 = arith.constant 0 : index
    %c0_38 = arith.constant 0 : index
    %79 = vector.load %arg12[%c0_37, %c0_38] : memref<128x128xbf16, #tpu.memory_space<vmem>>, vector<128x128xbf16>
    %cst_39 = arith.constant dense<0.000000e+00> : vector<8x128xf32>
    %80 = tpu.matmul %78, %79, %cst_39 {dimension_numbers = #tpu.dot_dimension_numbers<[1], [0], [0], [1], [0, 0, 1, 1], [], []>} : vector<8x128xbf16>, vector<128x128xbf16>, vector<8x128xf32> -> vector<8x128xf32>
    %c0_40 = arith.constant 0 : index
    %c0_41 = arith.constant 0 : index
    %81 = vector.load %arg13[%c0_40, %c0_41] : memref<1x128xf32, #tpu.memory_space<vmem>>, vector<1x128xf32>
    %82 = vector.broadcast %81 : vector<1x128xf32> to vector<8x128xf32>
    %83 = arith.addf %80, %82 : vector<8x128xf32>
    %cst_42 = arith.constant 0.000000e+00 : f32
    %84 = vector.broadcast %cst_42 : f32 to vector<8x128xf32>
    %85 = arith.maximumf %83, %84 : vector<8x128xf32>
    %c0_43 = arith.constant 0 : index
    %c0_44 = arith.constant 0 : index
    %86 = vector.load %arg14[%c0_43, %c0_44] : memref<1x128xf32, #tpu.memory_space<vmem>>, vector<1x128xf32>
    %87 = vector.broadcast %86 : vector<1x128xf32> to vector<8x128xf32>
    %88 = arith.mulf %85, %87 : vector<8x128xf32>
    %cst_45 = arith.constant dense<0.000000e+00> : vector<8xf32>
    %89 = vector.multi_reduction <add>, %88, %cst_45 [1] : vector<8x128xf32> to vector<8xf32>
    %90 = vector.shape_cast %89 : vector<8xf32> to vector<8x1xf32>
    %c0_46 = arith.constant 0 : index
    %c0_47 = arith.constant 0 : index
    %91 = vector.load %arg15[%c0_46, %c0_47] : memref<1x1xf32, #tpu.memory_space<vmem>>, vector<1x1xf32>
    %92 = vector.broadcast %91 : vector<1x1xf32> to vector<8x1xf32>
    %93 = arith.addf %90, %92 : vector<8x1xf32>
    %c0_48 = arith.constant 0 : index
    %c0_49 = arith.constant 0 : index
    %94 = vector.load %arg16[%c0_48, %c0_49] : memref<8x1xf32, #tpu.memory_space<vmem>>, vector<8x1xf32>
    tpu.vector_store %arg16[%c0_48, %c0_49], %93 {strides = array<i32>} : memref<8x1xf32, #tpu.memory_space<vmem>>, vector<8x1xf32>,
    return
  }
  func.func @transform_0(%arg0: i32) -> (i32, i32) {
    %c0_i32 = arith.constant 0 : i32
    %c0_i32_0 = arith.constant 0 : i32
    return %arg0, %c0_i32 : i32, i32
  }
  func.func @transform_1(%arg0: i32) -> (i32, i32) {
    %c0_i32 = arith.constant 0 : i32
    %c0_i32_0 = arith.constant 0 : i32
    return %arg0, %c0_i32 : i32, i32
  }
  func.func @transform_2(%arg0: i32) -> (i32, i32) {
    %c0_i32 = arith.constant 0 : i32
    %c0_i32_0 = arith.constant 0 : i32
    %c0_i32_1 = arith.constant 0 : i32
    return %c0_i32, %c0_i32_0 : i32, i32
  }
  func.func @transform_3(%arg0: i32) -> (i32, i32) {
    %c0_i32 = arith.constant 0 : i32
    %c0_i32_0 = arith.constant 0 : i32
    %c0_i32_1 = arith.constant 0 : i32
    return %c0_i32, %c0_i32_0 : i32, i32
  }
  func.func @transform_4(%arg0: i32) -> (i32, i32) {
    %c0_i32 = arith.constant 0 : i32
    %c0_i32_0 = arith.constant 0 : i32
    %c0_i32_1 = arith.constant 0 : i32
    return %c0_i32, %c0_i32_0 : i32, i32
  }
  func.func @transform_5(%arg0: i32) -> (i32, i32) {
    %c0_i32 = arith.constant 0 : i32
    %c0_i32_0 = arith.constant 0 : i32
    %c0_i32_1 = arith.constant 0 : i32
    return %c0_i32, %c0_i32_0 : i32, i32
  }
  func.func @transform_6(%arg0: i32) -> (i32, i32) {
    %c0_i32 = arith.constant 0 : i32
    %c0_i32_0 = arith.constant 0 : i32
    %c0_i32_1 = arith.constant 0 : i32
    return %c0_i32, %c0_i32_0 : i32, i32
  }
  func.func @transform_7(%arg0: i32) -> (i32, i32) {
    %c0_i32 = arith.constant 0 : i32
    %c0_i32_0 = arith.constant 0 : i32
    %c0_i32_1 = arith.constant 0 : i32
    return %c0_i32, %c0_i32_0 : i32, i32
  }
  func.func @transform_8(%arg0: i32) -> (i32, i32) {
    %c0_i32 = arith.constant 0 : i32
    %c0_i32_0 = arith.constant 0 : i32
    %c0_i32_1 = arith.constant 0 : i32
    return %c0_i32, %c0_i32_0 : i32, i32
  }
  func.func @transform_9(%arg0: i32) -> (i32, i32) {
    %c0_i32 = arith.constant 0 : i32
    %c0_i32_0 = arith.constant 0 : i32
    %c0_i32_1 = arith.constant 0 : i32
    return %c0_i32, %c0_i32_0 : i32, i32
  }
  func.func @transform_10(%arg0: i32) -> (i32, i32) {
    %c0_i32 = arith.constant 0 : i32
    %c0_i32_0 = arith.constant 0 : i32
    %c0_i32_1 = arith.constant 0 : i32
    return %c0_i32, %c0_i32_0 : i32, i32
  }
  func.func @transform_11(%arg0: i32) -> (i32, i32) {
    %c0_i32 = arith.constant 0 : i32
    %c0_i32_0 = arith.constant 0 : i32
    %c0_i32_1 = arith.constant 0 : i32
    return %c0_i32, %c0_i32_0 : i32, i32
  }
  func.func @transform_12(%arg0: i32) -> (i32, i32) {
    %c0_i32 = arith.constant 0 : i32
    %c0_i32_0 = arith.constant 0 : i32
    %c0_i32_1 = arith.constant 0 : i32
    return %c0_i32, %c0_i32_0 : i32, i32
  }
  func.func @transform_13(%arg0: i32) -> (i32, i32) {
    %c0_i32 = arith.constant 0 : i32
    %c0_i32_0 = arith.constant 0 : i32
    %c0_i32_1 = arith.constant 0 : i32
    return %c0_i32, %c0_i32_0 : i32, i32
  }
  func.func @transform_14(%arg0: i32) -> (i32, i32) {
    %c0_i32 = arith.constant 0 : i32
    %c0_i32_0 = arith.constant 0 : i32
    %c0_i32_1 = arith.constant 0 : i32
    return %c0_i32, %c0_i32_0 : i32, i32
  }
  func.func @transform_15(%arg0: i32) -> (i32, i32) {
    %c0_i32 = arith.constant 0 : i32
    %c0_i32_0 = arith.constant 0 : i32
    return %arg0, %c0_i32 : i32, i32
  }
}

</mosaic_0001>

<llo_original>
// kernel: regression_model_forward.1
$region0: #{regression_model_forward.1}
  #allocation0 [shape = 'u32[]', space=smem, size = 0x4, offset = 0x4, fixed_abs, tag = 'smem constant byte address 0x4 - core index']
  #allocation1 [shape = 'u32[144,128]{1,0:T(1,128)}', space=vmem, size = 0x12000, scoped, tag = 'internal scratch']
  #allocation2 [shape = 'f32[1,1]{1,0:T(1,128)S(1)}', space=vmem, size = 0x200, scoped, tag = 'scoped memory for regression_model_forward.1']
  %s0 = inlined_call_operand.vmem [shape: s32[16,16], index: 0, kind: input, shape index: {}]
  %s1 = inlined_call_operand.vmem [shape: f32[16,16], index: 1, kind: input, shape index: {}]
  %s2 = inlined_call_operand.hbm [shape: f32[128,128], index: 2, kind: input, shape index: {}]
  %s3 = inlined_call_operand.hbm [shape: bf16[128,128], index: 3, kind: input, shape index: {}]
  %s4 = inlined_call_operand.vmem [shape: f32[1,128], index: 4, kind: input, shape index: {}]
  %s5 = inlined_call_operand.hbm [shape: bf16[128,128], index: 5, kind: input, shape index: {}]
  %s6 = inlined_call_operand.vmem [shape: f32[1,128], index: 6, kind: input, shape index: {}]
  %s7 = inlined_call_operand.hbm [shape: bf16[128,128], index: 7, kind: input, shape index: {}]
  %s8 = inlined_call_operand.hbm [shape: f32[1,128], index: 8, kind: input, shape index: {}]
  %s9 = inlined_call_operand.hbm [shape: f32[1,128], index: 9, kind: input, shape index: {}]
  %s10 = inlined_call_operand.hbm [shape: f32[1,128], index: 10, kind: input, shape index: {}]
  %s11 = inlined_call_operand.hbm [shape: bf16[128,128], index: 11, kind: input, shape index: {}]
  %s12 = inlined_call_operand.vmem [shape: f32[1,128], index: 12, kind: input, shape index: {}]
  %s13 = inlined_call_operand.vmem [shape: f32[1,128], index: 13, kind: input, shape index: {}]
  %s14 = inlined_call_operand.<no memory space> [shape: f32[1,1], index: 14, kind: input, shape index: {}]
  %s15 = inlined_call_operand.vmem [shape: f32[16,1], index: 15, kind: output, shape index: {}]
  %s16 = sld [smem:[#allocation0]]
  $region125: #{regression_model_forward.1} parent=0
    _
  %s18 = ssub.s32 1, %s16
  %s19 = scalar_select 0, %s18, %s16
  %v20 = vstv %s14
  %21 = vst [vmem:[#allocation2] sm:$0x1] %v20
  $region1: #{regression_model_forward.1} parent=0
    #allocation3 [shape = 'u8[65536]{0}', space=vmem, size = 0x10000, scoped, tag = 'input window, operand 2, single buffered']
    #allocation4 [shape = 's32[2]{0}', space=sflag, size = 0x8, scoped, tag = 'scoped memory for regression_model_forward.1']
    #allocation5 [shape = 'u8[32768]{0}', space=vmem, size = 0x8000, scoped, tag = 'input window, operand 3, single buffered']
    #allocation6 [shape = 's32[1]{0}', space=sflag, size = 0x4, scoped, tag = 'scoped memory for regression_model_forward.1']
    #allocation7 [shape = 'u8[32768]{0}', space=vmem, size = 0x8000, scoped, tag = 'input window, operand 5, single buffered']
    #allocation8 [shape = 'u8[32768]{0}', space=vmem, size = 0x8000, scoped, tag = 'input window, operand 7, single buffered']
    #allocation9 [shape = 's32[1]{0}', space=sflag, size = 0x4, scoped, tag = 'scoped memory for regression_model_forward.1']
    #allocation10 [shape = 'u8[512]{0}', space=vmem, size = 0x400, scoped, tag = 'input window, operand 8, single buffered']
    #allocation11 [shape = 'u8[512]{0}', space=vmem, size = 0x400, scoped, tag = 'input window, operand 9, single buffered']
    #allocation12 [shape = 's32[1]{0}', space=sflag, size = 0x4, scoped, tag = 'scoped memory for regression_model_forward.1']
    #allocation13 [shape = 'u8[512]{0}', space=vmem, size = 0x400, scoped, tag = 'input window, operand 10, single buffered']
    #allocation14 [shape = 'u8[32768]{0}', space=vmem, size = 0x8000, scoped, tag = 'input window, operand 11, single buffered']
    #allocation15 [shape = 's32[1]{0}', space=sflag, size = 0x4, scoped, tag = 'scoped memory for regression_model_forward.1']
    %22 = vsyncpa [#allocation4], 0
    %23 = vsyncpa [#allocation6], 0
    %24 = vsyncpa [#allocation9], 0
    %25 = vsyncpa [#allocation12], 0
    %26 = vsyncpa [#allocation15], 0
    loop: start=0, step=1, limit=4
    $region2: #{regression_model_forward.1} parent=1 // loop_pre_header
      _
    $region3: #{regression_model_forward.1} parent=1 // loop_header
      %s28 = sphi 0, %s32
      %p29 = scmp.ge.s32.totalorder %s28, 4
      %s38 = sphi 0, %s40
      %s41 = sphi 0, %s38
      %s42 = sphi 0, %s41
      %s58 = sphi 0, %s42
      %s64 = sphi 0, %s66
      %s67 = sphi 0, %s64
      %s68 = sphi 0, %s67
      %s84 = sphi 0, %s68
      %s88 = sphi 0, %s88
      %s90 = sphi 0, %s88
      %s91 = sphi 0, %s90
      %s105 = sphi 0, %s91
      %s109 = sphi 0, %s109
      %s111 = sphi 0, %s109
      %s112 = sphi 0, %s111
      %s126 = sphi 0, %s112
      %s130 = sphi 0, %s130
      %s132 = sphi 0, %s130
      %s133 = sphi 0, %s132
      %s147 = sphi 0, %s133
      %s151 = sphi 0, %s151
      %s153 = sphi 0, %s151
      %s154 = sphi 0, %s153
      %s168 = sphi 0, %s154
      %s172 = sphi 0, %s172
      %s174 = sphi 0, %s172
      %s175 = sphi 0, %s174
      %s189 = sphi 0, %s175
      %s193 = sphi 0, %s193
      %s195 = sphi 0, %s193
      %s196 = sphi 0, %s195
      %s210 = sphi 0, %s196
      %s214 = sphi 0, %s214
      %s216 = sphi 0, %s214
      %s217 = sphi 0, %s216
      %s231 = sphi 0, %s217
      %s235 = sphi 0, %s235
      %s237 = sphi 0, %s235
      %s238 = sphi 0, %s237
      %s252 = sphi 0, %s238
      %s256 = sphi 0, %s256
      %s258 = sphi 0, %s256
      %s259 = sphi 0, %s258
      %s273 = sphi 0, %s259
      %s277 = sphi 0, %s277
      %s279 = sphi 0, %s277
      %s280 = sphi 0, %s279
      %s294 = sphi 0, %s280
      %s298 = sphi 0, %s298
      %s300 = sphi 0, %s298
      %s301 = sphi 0, %s300
      %s315 = sphi 0, %s301
      %s319 = sphi 0, %s319
      %s321 = sphi 0, %s319
      %s322 = sphi 0, %s321
      %s336 = sphi 0, %s322
      %s340 = sphi 0, %s340
      %s342 = sphi 0, %s340
      %s343 = sphi 0, %s342
      %s357 = sphi 0, %s343
      %s363 = sphi 0, %s365
      %s366 = sphi 0, %s363
      %s367 = sphi 0, %s366
      %s383 = sphi 0, %s367
    $region4: #{regression_model_forward.1} parent=1 // loop_header_branch
      %31 = sbr.rel (%p29) target = $region8
    $region5: #{regression_model_forward.1} parent=1 // loop_body
      %s33 = ssub.s32 %s28, 1
      %s34 = ssub.s32 %s28, 2
      %s35 = sadd.s32 %s28, 1
      %s36 = ssub.s32 %s28, %s35
      %p37 = scmp.eq.s32.totalorder %s36, 0
      %s39 = sadd.s32 %s38, 1
      %s40 = scalar_select %p37, %s38, %s39
      %p43 = pneg %p37
      %p44 = scmp.eq.s32.totalorder %s28, 1
      %p45 = por %p43, %p44
      %p46 = scmp.ne.s32.totalorder %s38, %s41
      %p47 = scmp.eq.s32.totalorder %s28, 0
      %p48 = por %p46, %p47
      %p49 = scmp.ne.s32.totalorder %s38, %s41
      %p50 = scmp.eq.s32.totalorder %s33, 1
      %p51 = por %p49, %p50
      %p52 = scmp.ne.s32.totalorder %s41, %s42
      %p53 = scmp.eq.s32.totalorder %s33, 0
      %p54 = por %p52, %p53
      %p55 = scmp.ne.s32.totalorder %s41, %s42
      %p56 = scmp.eq.s32.totalorder %s34, 1
      %p57 = por %p55, %p56
      %p59 = scmp.ne.s32.totalorder %s42, %s58
      %p60 = scmp.eq.s32.totalorder %s34, 0
      %p61 = por %p59, %p60
      %s62 = ssub.s32 %s28, %s35
      %p63 = scmp.eq.s32.totalorder %s62, 0
      %s65 = sadd.s32 %s64, 1
      %s66 = scalar_select %p63, %s64, %s65
      %p69 = pneg %p63
      %p70 = scmp.eq.s32.totalorder %s28, 1
      %p71 = por %p69, %p70
      %p72 = scmp.ne.s32.totalorder %s64, %s67
      %p73 = scmp.eq.s32.totalorder %s28, 0
      %p74 = por %p72, %p73
      %p75 = scmp.ne.s32.totalorder %s64, %s67
      %p76 = scmp.eq.s32.totalorder %s33, 1
      %p77 = por %p75, %p76
      %p78 = scmp.ne.s32.totalorder %s67, %s68
      %p79 = scmp.eq.s32.totalorder %s33, 0
      %p80 = por %p78, %p79
      %p81 = scmp.ne.s32.totalorder %s67, %s68
      %p82 = scmp.eq.s32.totalorder %s34, 1
      %p83 = por %p81, %p82
      %p85 = scmp.ne.s32.totalorder %s68, %s84
      %p86 = scmp.eq.s32.totalorder %s34, 0
      %p87 = por %p85, %p86
      %s89 = sadd.s32 %s88, 1
      %p92 = scmp.eq.s32.totalorder %s28, 1
      %p93 = scmp.ne.s32.totalorder %s88, %s90
      %p94 = scmp.eq.s32.totalorder %s28, 0
      %p95 = por %p93, %p94
      %p96 = scmp.ne.s32.totalorder %s88, %s90
      %p97 = scmp.eq.s32.totalorder %s33, 1
      %p98 = por %p96, %p97
      %p99 = scmp.ne.s32.totalorder %s90, %s91
      %p100 = scmp.eq.s32.totalorder %s33, 0
      %p101 = por %p99, %p100
      %p102 = scmp.ne.s32.totalorder %s90, %s91
      %p103 = scmp.eq.s32.totalorder %s34, 1
      %p104 = por %p102, %p103
      %p106 = scmp.ne.s32.totalorder %s91, %s105
      %p107 = scmp.eq.s32.totalorder %s34, 0
      %p108 = por %p106, %p107
      %s110 = sadd.s32 %s109, 1
      %p113 = scmp.eq.s32.totalorder %s28, 1
      %p114 = scmp.ne.s32.totalorder %s109, %s111
      %p115 = scmp.eq.s32.totalorder %s28, 0
      %p116 = por %p114, %p115
      %p117 = scmp.ne.s32.totalorder %s109, %s111
      %p118 = scmp.eq.s32.totalorder %s33, 1
      %p119 = por %p117, %p118
      %p120 = scmp.ne.s32.totalorder %s111, %s112
      %p121 = scmp.eq.s32.totalorder %s33, 0
      %p122 = por %p120, %p121
      %p123 = scmp.ne.s32.totalorder %s111, %s112
      %p124 = scmp.eq.s32.totalorder %s34, 1
      %p125 = por %p123, %p124
      %p127 = scmp.ne.s32.totalorder %s112, %s126
      %p128 = scmp.eq.s32.totalorder %s34, 0
      %p129 = por %p127, %p128
      %s131 = sadd.s32 %s130, 1
      %p134 = scmp.eq.s32.totalorder %s28, 1
      %p135 = scmp.ne.s32.totalorder %s130, %s132
      %p136 = scmp.eq.s32.totalorder %s28, 0
      %p137 = por %p135, %p136
      %p138 = scmp.ne.s32.totalorder %s130, %s132
      %p139 = scmp.eq.s32.totalorder %s33, 1
      %p140 = por %p138, %p139
      %p141 = scmp.ne.s32.totalorder %s132, %s133
      %p142 = scmp.eq.s32.totalorder %s33, 0
      %p143 = por %p141, %p142
      %p144 = scmp.ne.s32.totalorder %s132, %s133
      %p145 = scmp.eq.s32.totalorder %s34, 1
      %p146 = por %p144, %p145
      %p148 = scmp.ne.s32.totalorder %s133, %s147
      %p149 = scmp.eq.s32.totalorder %s34, 0
      %p150 = por %p148, %p149
      %s152 = sadd.s32 %s151, 1
      %p155 = scmp.eq.s32.totalorder %s28, 1
      %p156 = scmp.ne.s32.totalorder %s151, %s153
      %p157 = scmp.eq.s32.totalorder %s28, 0
      %p158 = por %p156, %p157
      %p159 = scmp.ne.s32.totalorder %s151, %s153
      %p160 = scmp.eq.s32.totalorder %s33, 1
      %p161 = por %p159, %p160
      %p162 = scmp.ne.s32.totalorder %s153, %s154
      %p163 = scmp.eq.s32.totalorder %s33, 0
      %p164 = por %p162, %p163
      %p165 = scmp.ne.s32.totalorder %s153, %s154
      %p166 = scmp.eq.s32.totalorder %s34, 1
      %p167 = por %p165, %p166
      %p169 = scmp.ne.s32.totalorder %s154, %s168
      %p170 = scmp.eq.s32.totalorder %s34, 0
      %p171 = por %p169, %p170
      %s173 = sadd.s32 %s172, 1
      %p176 = scmp.eq.s32.totalorder %s28, 1
      %p177 = scmp.ne.s32.totalorder %s172, %s174
      %p178 = scmp.eq.s32.totalorder %s28, 0
      %p179 = por %p177, %p178
      %p180 = scmp.ne.s32.totalorder %s172, %s174
      %p181 = scmp.eq.s32.totalorder %s33, 1
      %p182 = por %p180, %p181
      %p183 = scmp.ne.s32.totalorder %s174, %s175
      %p184 = scmp.eq.s32.totalorder %s33, 0
      %p185 = por %p183, %p184
      %p186 = scmp.ne.s32.totalorder %s174, %s175
      %p187 = scmp.eq.s32.totalorder %s34, 1
      %p188 = por %p186, %p187
      %p190 = scmp.ne.s32.totalorder %s175, %s189
      %p191 = scmp.eq.s32.totalorder %s34, 0
      %p192 = por %p190, %p191
      %s194 = sadd.s32 %s193, 1
      %p197 = scmp.eq.s32.totalorder %s28, 1
      %p198 = scmp.ne.s32.totalorder %s193, %s195
      %p199 = scmp.eq.s32.totalorder %s28, 0
      %p200 = por %p198, %p199
      %p201 = scmp.ne.s32.totalorder %s193, %s195
      %p202 = scmp.eq.s32.totalorder %s33, 1
      %p203 = por %p201, %p202
      %p204 = scmp.ne.s32.totalorder %s195, %s196
      %p205 = scmp.eq.s32.totalorder %s33, 0
      %p206 = por %p204, %p205
      %p207 = scmp.ne.s32.totalorder %s195, %s196
      %p208 = scmp.eq.s32.totalorder %s34, 1
      %p209 = por %p207, %p208
      %p211 = scmp.ne.s32.totalorder %s196, %s210
      %p212 = scmp.eq.s32.totalorder %s34, 0
      %p213 = por %p211, %p212
      %s215 = sadd.s32 %s214, 1
      %p218 = scmp.eq.s32.totalorder %s28, 1
      %p219 = scmp.ne.s32.totalorder %s214, %s216
      %p220 = scmp.eq.s32.totalorder %s28, 0
      %p221 = por %p219, %p220
      %p222 = scmp.ne.s32.totalorder %s214, %s216
      %p223 = scmp.eq.s32.totalorder %s33, 1
      %p224 = por %p222, %p223
      %p225 = scmp.ne.s32.totalorder %s216, %s217
      %p226 = scmp.eq.s32.totalorder %s33, 0
      %p227 = por %p225, %p226
      %p228 = scmp.ne.s32.totalorder %s216, %s217
      %p229 = scmp.eq.s32.totalorder %s34, 1
      %p230 = por %p228, %p229
      %p232 = scmp.ne.s32.totalorder %s217, %s231
      %p233 = scmp.eq.s32.totalorder %s34, 0
      %p234 = por %p232, %p233
      %s236 = sadd.s32 %s235, 1
      %p239 = scmp.eq.s32.totalorder %s28, 1
      %p240 = scmp.ne.s32.totalorder %s235, %s237
      %p241 = scmp.eq.s32.totalorder %s28, 0
      %p242 = por %p240, %p241
      %p243 = scmp.ne.s32.totalorder %s235, %s237
      %p244 = scmp.eq.s32.totalorder %s33, 1
      %p245 = por %p243, %p244
      %p246 = scmp.ne.s32.totalorder %s237, %s238
      %p247 = scmp.eq.s32.totalorder %s33, 0
      %p248 = por %p246, %p247
      %p249 = scmp.ne.s32.totalorder %s237, %s238
      %p250 = scmp.eq.s32.totalorder %s34, 1
      %p251 = por %p249, %p250
      %p253 = scmp.ne.s32.totalorder %s238, %s252
      %p254 = scmp.eq.s32.totalorder %s34, 0
      %p255 = por %p253, %p254
      %s257 = sadd.s32 %s256, 1
      %p260 = scmp.eq.s32.totalorder %s28, 1
      %p261 = scmp.ne.s32.totalorder %s256, %s258
      %p262 = scmp.eq.s32.totalorder %s28, 0
      %p263 = por %p261, %p262
      %p264 = scmp.ne.s32.totalorder %s256, %s258
      %p265 = scmp.eq.s32.totalorder %s33, 1
      %p266 = por %p264, %p265
      %p267 = scmp.ne.s32.totalorder %s258, %s259
      %p268 = scmp.eq.s32.totalorder %s33, 0
      %p269 = por %p267, %p268
      %p270 = scmp.ne.s32.totalorder %s258, %s259
      %p271 = scmp.eq.s32.totalorder %s34, 1
      %p272 = por %p270, %p271
      %p274 = scmp.ne.s32.totalorder %s259, %s273
      %p275 = scmp.eq.s32.totalorder %s34, 0
      %p276 = por %p274, %p275
      %s278 = sadd.s32 %s277, 1
      %p281 = scmp.eq.s32.totalorder %s28, 1
      %p282 = scmp.ne.s32.totalorder %s277, %s279
      %p283 = scmp.eq.s32.totalorder %s28, 0
      %p284 = por %p282, %p283
      %p285 = scmp.ne.s32.totalorder %s277, %s279
      %p286 = scmp.eq.s32.totalorder %s33, 1
      %p287 = por %p285, %p286
      %p288 = scmp.ne.s32.totalorder %s279, %s280
      %p289 = scmp.eq.s32.totalorder %s33, 0
      %p290 = por %p288, %p289
      %p291 = scmp.ne.s32.totalorder %s279, %s280
      %p292 = scmp.eq.s32.totalorder %s34, 1
      %p293 = por %p291, %p292
      %p295 = scmp.ne.s32.totalorder %s280, %s294
      %p296 = scmp.eq.s32.totalorder %s34, 0
      %p297 = por %p295, %p296
      %s299 = sadd.s32 %s298, 1
      %p302 = scmp.eq.s32.totalorder %s28, 1
      %p303 = scmp.ne.s32.totalorder %s298, %s300
      %p304 = scmp.eq.s32.totalorder %s28, 0
      %p305 = por %p303, %p304
      %p306 = scmp.ne.s32.totalorder %s298, %s300
      %p307 = scmp.eq.s32.totalorder %s33, 1
      %p308 = por %p306, %p307
      %p309 = scmp.ne.s32.totalorder %s300, %s301
      %p310 = scmp.eq.s32.totalorder %s33, 0
      %p311 = por %p309, %p310
      %p312 = scmp.ne.s32.totalorder %s300, %s301
      %p313 = scmp.eq.s32.totalorder %s34, 1
      %p314 = por %p312, %p313
      %p316 = scmp.ne.s32.totalorder %s301, %s315
      %p317 = scmp.eq.s32.totalorder %s34, 0
      %p318 = por %p316, %p317
      %s320 = sadd.s32 %s319, 1
      %p323 = scmp.eq.s32.totalorder %s28, 1
      %p324 = scmp.ne.s32.totalorder %s319, %s321
      %p325 = scmp.eq.s32.totalorder %s28, 0
      %p326 = por %p324, %p325
      %p327 = scmp.ne.s32.totalorder %s319, %s321
      %p328 = scmp.eq.s32.totalorder %s33, 1
      %p329 = por %p327, %p328
      %p330 = scmp.ne.s32.totalorder %s321, %s322
      %p331 = scmp.eq.s32.totalorder %s33, 0
      %p332 = por %p330, %p331
      %p333 = scmp.ne.s32.totalorder %s321, %s322
      %p334 = scmp.eq.s32.totalorder %s34, 1
      %p335 = por %p333, %p334
      %p337 = scmp.ne.s32.totalorder %s322, %s336
      %p338 = scmp.eq.s32.totalorder %s34, 0
      %p339 = por %p337, %p338
      %s341 = sadd.s32 %s340, 1
      %p344 = scmp.eq.s32.totalorder %s28, 1
      %p345 = scmp.ne.s32.totalorder %s340, %s342
      %p346 = scmp.eq.s32.totalorder %s28, 0
      %p347 = por %p345, %p346
      %p348 = scmp.ne.s32.totalorder %s340, %s342
      %p349 = scmp.eq.s32.totalorder %s33, 1
      %p350 = por %p348, %p349
      %p351 = scmp.ne.s32.totalorder %s342, %s343
      %p352 = scmp.eq.s32.totalorder %s33, 0
      %p353 = por %p351, %p352
      %p354 = scmp.ne.s32.totalorder %s342, %s343
      %p355 = scmp.eq.s32.totalorder %s34, 1
      %p356 = por %p354, %p355
      %p358 = scmp.ne.s32.totalorder %s343, %s357
      %p359 = scmp.eq.s32.totalorder %s34, 0
      %p360 = por %p358, %p359
      %s361 = ssub.s32 %s28, %s35
      %p362 = scmp.eq.s32.totalorder %s361, 0
      %s364 = sadd.s32 %s363, 1
      %s365 = scalar_select %p362, %s363, %s364
      %p368 = pneg %p362
      %p369 = scmp.eq.s32.totalorder %s28, 1
      %p370 = por %p368, %p369
      %p371 = scmp.ne.s32.totalorder %s363, %s366
      %p372 = scmp.eq.s32.totalorder %s28, 0
      %p373 = por %p371, %p372
      %p374 = scmp.ne.s32.totalorder %s363, %s366
      %p375 = scmp.eq.s32.totalorder %s33, 1
      %p376 = por %p374, %p375
      %p377 = scmp.ne.s32.totalorder %s366, %s367
      %p378 = scmp.eq.s32.totalorder %s33, 0
      %p379 = por %p377, %p378
      %p380 = scmp.ne.s32.totalorder %s366, %s367
      %p381 = scmp.eq.s32.totalorder %s34, 1
      %p382 = por %p380, %p381
      %p384 = scmp.ne.s32.totalorder %s367, %s383
      %p385 = scmp.eq.s32.totalorder %s34, 0
      %p386 = por %p384, %p385
      %p387 = scmp.le.s32.totalorder 1, %s28
      %p388 = scmp.lt.s32.totalorder %s28, 3
      %p389 = pnand %p387, %p388
      %p390 = pneg %p389
      // Predicated region
      $region9: #{regression_model_forward.1} parent=5 // pred_check
        _
      $region10: #{regression_model_forward.1} parent=5 // pred_check_branch
        %392 = sbr.rel (%p389) target = $region12
      $region11: #{regression_model_forward.1} parent=5 // pred_region
        %s393 = ssub.s32 %s28, 1
        // Predicated region
        $region13: #{regression_model_forward.1} parent=11 // pred_check
          %p394 = pneg %p101
        $region14: #{regression_model_forward.1} parent=11 // pred_check_branch
          %396 = sbr.rel (%p394) target = $region16
        $region15: #{regression_model_forward.1} parent=11 // pred_region
          %s398 = ssub.s32 2048, 2048
          %399 = vsyncadd [#allocation4], %s398
          %s400 = sshll.u32 [#allocation3], 4
          %s401 = int_to_ptr.vmem [resolvable:$true] %s400
          %406 = dma.hbm_to_vmem [thread:$0]  %s2, 2048, %s401, [#allocation4], 128, 128, 8
        $region16: #{regression_model_forward.1} parent=11 // pred_fallthru
          _
        // Predicated region
        $region17: #{regression_model_forward.1} parent=11 // pred_check
          %p407 = pneg %p122
        $region18: #{regression_model_forward.1} parent=11 // pred_check_branch
          %409 = sbr.rel (%p407) target = $region20
        $region19: #{regression_model_forward.1} parent=11 // pred_region
          %s411 = ssub.s32 1024, 1024
          %412 = vsyncadd [#allocation6], %s411
          %s413 = sshll.u32 [#allocation5], 4
          %s414 = int_to_ptr.vmem [resolvable:$true] %s413
          %419 = dma.hbm_to_vmem [thread:$0]  %s3, 1024, %s414, [#allocation6], 64, 64, 4
        $region20: #{regression_model_forward.1} parent=11 // pred_fallthru
          _
        // Predicated region
        $region21: #{regression_model_forward.1} parent=11 // pred_check
          %p420 = pneg %p143
        $region22: #{regression_model_forward.1} parent=11 // pred_check_branch
          %422 = sbr.rel (%p420) target = $region24
        $region23: #{regression_model_forward.1} parent=11 // pred_region
          _
        $region24: #{regression_model_forward.1} parent=11 // pred_fallthru
          _
        // Predicated region
        $region25: #{regression_model_forward.1} parent=11 // pred_check
          %p423 = pneg %p164
        $region26: #{regression_model_forward.1} parent=11 // pred_check_branch
          %425 = sbr.rel (%p423) target = $region28
        $region27: #{regression_model_forward.1} parent=11 // pred_region
          %s427 = ssub.s32 1024, 1024
          %428 = vsyncadd [#allocation6], %s427
          %s429 = sshll.u32 [#allocation7], 4
          %s430 = int_to_ptr.vmem [resolvable:$true] %s429
          %435 = dma.hbm_to_vmem [thread:$0]  %s5, 1024, %s430, [#allocation6], 64, 64, 4
        $region28: #{regression_model_forward.1} parent=11 // pred_fallthru
          _
        // Predicated region
        $region29: #{regression_model_forward.1} parent=11 // pred_check
          %p436 = pneg %p185
        $region30: #{regression_model_forward.1} parent=11 // pred_check_branch
          %438 = sbr.rel (%p436) target = $region32
        $region31: #{regression_model_forward.1} parent=11 // pred_region
          _
        $region32: #{regression_model_forward.1} parent=11 // pred_fallthru
          _
        // Predicated region
        $region33: #{regression_model_forward.1} parent=11 // pred_check
          %p439 = pneg %p206
        $region34: #{regression_model_forward.1} parent=11 // pred_check_branch
          %441 = sbr.rel (%p439) target = $region36
        $region35: #{regression_model_forward.1} parent=11 // pred_region
          %s443 = ssub.s32 1024, 1024
          %444 = vsyncadd [#allocation9], %s443
          %s445 = sshll.u32 [#allocation8], 4
          %s446 = int_to_ptr.vmem [resolvable:$true] %s445
          %451 = dma.hbm_to_vmem [thread:$0]  %s7, 1024, %s446, [#allocation9], 64, 64, 4
        $region36: #{regression_model_forward.1} parent=11 // pred_fallthru
          _
        // Predicated region
        $region37: #{regression_model_forward.1} parent=11 // pred_check
          %p452 = pneg %p227
        $region38: #{regression_model_forward.1} parent=11 // pred_check_branch
          %454 = sbr.rel (%p452) target = $region40
        $region39: #{regression_model_forward.1} parent=11 // pred_region
          %s456 = ssub.s32 16, 16
          %457 = vsyncadd [#allocation9], %s456
          %s459 = sshll.u32 [#allocation10], 4
          %s460 = int_to_ptr.vmem [resolvable:$true] %s459
          %462 = dma.hbm_to_vmem [thread:$0]  %s8, 16, %s460, [#allocation9]
        $region40: #{regression_model_forward.1} parent=11 // pred_fallthru
          _
        // Predicated region
        $region41: #{regression_model_forward.1} parent=11 // pred_check
          %p463 = pneg %p248
        $region42: #{regression_model_forward.1} parent=11 // pred_check_branch
          %465 = sbr.rel (%p463) target = $region44
        $region43: #{regression_model_forward.1} parent=11 // pred_region
          %s467 = ssub.s32 16, 16
          %468 = vsyncadd [#allocation12], %s467
          %s470 = sshll.u32 [#allocation11], 4
          %s471 = int_to_ptr.vmem [resolvable:$true] %s470
          %473 = dma.hbm_to_vmem [thread:$0]  %s9, 16, %s471, [#allocation12]
        $region44: #{regression_model_forward.1} parent=11 // pred_fallthru
          _
        // Predicated region
        $region45: #{regression_model_forward.1} parent=11 // pred_check
          %p474 = pneg %p269
        $region46: #{regression_model_forward.1} parent=11 // pred_check_branch
          %476 = sbr.rel (%p474) target = $region48
        $region47: #{regression_model_forward.1} parent=11 // pred_region
          %s478 = ssub.s32 16, 16
          %479 = vsyncadd [#allocation12], %s478
          %s481 = sshll.u32 [#allocation13], 4
          %s482 = int_to_ptr.vmem [resolvable:$true] %s481
          %484 = dma.hbm_to_vmem [thread:$0]  %s10, 16, %s482, [#allocation12]
        $region48: #{regression_model_forward.1} parent=11 // pred_fallthru
          _
        // Predicated region
        $region49: #{regression_model_forward.1} parent=11 // pred_check
          %p485 = pneg %p290
        $region50: #{regression_model_forward.1} parent=11 // pred_check_branch
          %487 = sbr.rel (%p485) target = $region52
        $region51: #{regression_model_forward.1} parent=11 // pred_region
          %s489 = ssub.s32 1024, 1024
          %490 = vsyncadd [#allocation15], %s489
          %s491 = sshll.u32 [#allocation14], 4
          %s492 = int_to_ptr.vmem [resolvable:$true] %s491
          %497 = dma.hbm_to_vmem [thread:$0]  %s11, 1024, %s492, [#allocation15], 64, 64, 4
        $region52: #{regression_model_forward.1} parent=11 // pred_fallthru
          _
        // Predicated region
        $region53: #{regression_model_forward.1} parent=11 // pred_check
          %p498 = pneg %p311
        $region54: #{regression_model_forward.1} parent=11 // pred_check_branch
          %500 = sbr.rel (%p498) target = $region56
        $region55: #{regression_model_forward.1} parent=11 // pred_region
          _
        $region56: #{regression_model_forward.1} parent=11 // pred_fallthru
          _
        // Predicated region
        $region57: #{regression_model_forward.1} parent=11 // pred_check
          %p501 = pneg %p332
        $region58: #{regression_model_forward.1} parent=11 // pred_check_branch
          %503 = sbr.rel (%p501) target = $region60
        $region59: #{regression_model_forward.1} parent=11 // pred_region
          _
        $region60: #{regression_model_forward.1} parent=11 // pred_fallthru
          _
        // Predicated region
        $region61: #{regression_model_forward.1} parent=11 // pred_check
          %p504 = pneg %p353
        $region62: #{regression_model_forward.1} parent=11 // pred_check_branch
          %506 = sbr.rel (%p504) target = $region64
        $region63: #{regression_model_forward.1} parent=11 // pred_region
          _
        $region64: #{regression_model_forward.1} parent=11 // pred_fallthru
          _
      $region12: #{regression_model_forward.1} parent=5 // pred_fallthru
        _
      %p507 = scmp.lt.s32.totalorder %s28, 2
      // Predicated region
      $region65: #{regression_model_forward.1} parent=5 // pred_check
        %p508 = pneg %p507
      $region66: #{regression_model_forward.1} parent=5 // pred_check_branch
        %510 = sbr.rel (%p508) target = $region68
      $region67: #{regression_model_forward.1} parent=5 // pred_region
        // Predicated region
        $region69: #{regression_model_forward.1} parent=67 // pred_check
          %p511 = pneg %p48
        $region70: #{regression_model_forward.1} parent=67 // pred_check_branch
          %513 = sbr.rel (%p511) target = $region72
        $region71: #{regression_model_forward.1} parent=67 // pred_region
          %p514 = scmp.lt.s32.totalorder %s28, 1
          %s515 = scalar_select %p514, %s28, 1
          %s516 = smul.addr %s515, 8
          %s517 = scalar_lea.vmem %s0, %s516
        $region72: #{regression_model_forward.1} parent=67 // pred_fallthru
          _
        // Predicated region
        $region73: #{regression_model_forward.1} parent=67 // pred_check
          %p518 = pneg %p74
        $region74: #{regression_model_forward.1} parent=67 // pred_check_branch
          %520 = sbr.rel (%p518) target = $region76
        $region75: #{regression_model_forward.1} parent=67 // pred_region
          %p521 = scmp.lt.s32.totalorder %s28, 1
          %s522 = scalar_select %p521, %s28, 1
          %s523 = smul.addr %s522, 8
          %s524 = scalar_lea.vmem %s1, %s523
        $region76: #{regression_model_forward.1} parent=67 // pred_fallthru
          _
      $region68: #{regression_model_forward.1} parent=5 // pred_fallthru
        _
      %p525 = scmp.le.s32.totalorder 1, %s28
      %p526 = scmp.lt.s32.totalorder %s28, 3
      %p527 = pnand %p525, %p526
      %p528 = pneg %p527
      // Predicated region
      $region77: #{regression_model_forward.1} parent=5 // pred_check
        _
      $region78: #{regression_model_forward.1} parent=5 // pred_check_branch
        %530 = sbr.rel (%p527) target = $region80
      $region79: #{regression_model_forward.1} parent=5 // pred_region
        %s531 = ssub.s32 %s28, 1
        // Predicated region
        $region81: #{regression_model_forward.1} parent=79 // pred_check
          %p532 = pneg %p101
        $region82: #{regression_model_forward.1} parent=79 // pred_check_branch
          %534 = sbr.rel (%p532) target = $region84
        $region83: #{regression_model_forward.1} parent=79 // pred_region
          %535 = dma.done [#allocation4], 2048
        $region84: #{regression_model_forward.1} parent=79 // pred_fallthru
          _
        // Predicated region
        $region85: #{regression_model_forward.1} parent=79 // pred_check
          %p536 = pneg %p122
        $region86: #{regression_model_forward.1} parent=79 // pred_check_branch
          %538 = sbr.rel (%p536) target = $region88
        $region87: #{regression_model_forward.1} parent=79 // pred_region
          %539 = dma.done [#allocation6], 1024
        $region88: #{regression_model_forward.1} parent=79 // pred_fallthru
          _
        // Predicated region
        $region89: #{regression_model_forward.1} parent=79 // pred_check
          %p540 = pneg %p164
        $region90: #{regression_model_forward.1} parent=79 // pred_check_branch
          %542 = sbr.rel (%p540) target = $region92
        $region91: #{regression_model_forward.1} parent=79 // pred_region
          %543 = dma.done [#allocation6], 1024
        $region92: #{regression_model_forward.1} parent=79 // pred_fallthru
          _
        // Predicated region
        $region93: #{regression_model_forward.1} parent=79 // pred_check
          %p544 = pneg %p206
        $region94: #{regression_model_forward.1} parent=79 // pred_check_branch
          %546 = sbr.rel (%p544) target = $region96
        $region95: #{regression_model_forward.1} parent=79 // pred_region
          %547 = dma.done [#allocation9], 1024
        $region96: #{regression_model_forward.1} parent=79 // pred_fallthru
          _
        // Predicated region
        $region97: #{regression_model_forward.1} parent=79 // pred_check
          %p548 = pneg %p227
        $region98: #{regression_model_forward.1} parent=79 // pred_check_branch
          %550 = sbr.rel (%p548) target = $region100
        $region99: #{regression_model_forward.1} parent=79 // pred_region
          %551 = dma.done [#allocation9], 16
        $region100: #{regression_model_forward.1} parent=79 // pred_fallthru
          _
        // Predicated region
        $region101: #{regression_model_forward.1} parent=79 // pred_check
          %p552 = pneg %p248
        $region102: #{regression_model_forward.1} parent=79 // pred_check_branch
          %554 = sbr.rel (%p552) target = $region104
        $region103: #{regression_model_forward.1} parent=79 // pred_region
          %555 = dma.done [#allocation12], 16
        $region104: #{regression_model_forward.1} parent=79 // pred_fallthru
          _
        // Predicated region
        $region105: #{regression_model_forward.1} parent=79 // pred_check
          %p556 = pneg %p269
        $region106: #{regression_model_forward.1} parent=79 // pred_check_branch
          %558 = sbr.rel (%p556) target = $region108
        $region107: #{regression_model_forward.1} parent=79 // pred_region
          %559 = dma.done [#allocation12], 16
        $region108: #{regression_model_forward.1} parent=79 // pred_fallthru
          _
        // Predicated region
        $region109: #{regression_model_forward.1} parent=79 // pred_check
          %p560 = pneg %p290
        $region110: #{regression_model_forward.1} parent=79 // pred_check_branch
          %562 = sbr.rel (%p560) target = $region112
        $region111: #{regression_model_forward.1} parent=79 // pred_region
          %563 = dma.done [#allocation15], 1024
        $region112: #{regression_model_forward.1} parent=79 // pred_fallthru
          _
        %p564 = scmp.lt.s32.totalorder %s33, 1
        %s565 = scalar_select %p564, %s33, 1
        %s566 = smul.addr %s565, 8
        %s567 = scalar_lea.vmem %s0, %s566
        %p568 = pneg %p54
        %p569 = pneg %p51
        %p570 = scmp.lt.s32.totalorder %s33, 1
        %s571 = scalar_select %p570, %s33, 1
        %s572 = smul.addr %s571, 8
        %s573 = scalar_lea.vmem %s1, %s572
        %p574 = pneg %p80
        %p575 = pneg %p77
        %p576 = pneg %p101
        %p577 = pneg %p98
        %p578 = pneg %p122
        %p579 = pneg %p119
        %p580 = pneg %p143
        %p581 = pneg %p140
        %p582 = pneg %p164
        %p583 = pneg %p161
        %p584 = pneg %p185
        %p585 = pneg %p182
        %p586 = pneg %p206
        %p587 = pneg %p203
        %p588 = pneg %p227
        %p589 = pneg %p224
        %p590 = pneg %p248
        %p591 = pneg %p245
        %p592 = pneg %p269
        %p593 = pneg %p266
        %p594 = pneg %p290
        %p595 = pneg %p287
        %p596 = pneg %p311
        %p597 = pneg %p308
        %p598 = pneg %p332
        %p599 = pneg %p329
        %p600 = pneg %p353
        %p601 = pneg %p350
        %p602 = pneg %p379
        %p603 = pneg %p376
        %p604 = scmp.lt.s32.totalorder %s33, 1
        %s605 = scalar_select %p604, %s33, 1
        %s606 = smul.addr %s605, 8
        %s607 = scalar_lea.vmem %s15, %s606
        %p608 = scmp.lt.s32.totalorder %s33, 1
        %s609 = scalar_select %p608, %s33, 1
        %s610 = smul.addr %s609, 8
        %s611 = scalar_lea.vmem %s0, %s610
        %p612 = scmp.lt.s32.totalorder %s33, 1
        %s613 = scalar_select %p612, %s33, 1
        %s614 = smul.addr %s613, 8
        %s615 = scalar_lea.vmem %s1, %s614
        %p616 = scmp.lt.s32.totalorder %s33, 1
        %s617 = scalar_select %p616, %s33, 1
        %s618 = smul.addr %s617, 8
        %s619 = scalar_lea.vmem %s15, %s618
        %v621 = vld [vmem:[%s611] sm:$0xff]
        %v622 = vld [vmem:[%s615] sm:$0xff]
        %v623 = vlaneseq
        %v624 = vshrl.u32 %v623, 7
        %v625 = vsub.s32 0, %v624
        %v626 = vrot.slane %v621, %v625
        %628 = vbcast.lane.b32.xlu0 %v626, 256
        %v629 = vpop.permute.xlu0 %628
        %s631 = sor.u32 256, 8
        %632 = vbcast.lane.b32.xlu0 %v626, %s631
        %v633 = vpop.permute.xlu0 %632
        %v634 = vlaneseq
        %v635 = vshrl.u32 %v634, 7
        %v636 = vsub.s32 1, %v635
        %v637 = vrot.slane %v621, %v636
        %639 = vbcast.lane.b32.xlu0 %v637, 256
        %v640 = vpop.permute.xlu0 %639
        %s642 = sor.u32 256, 8
        %643 = vbcast.lane.b32.xlu0 %v637, %s642
        %v644 = vpop.permute.xlu0 %643
        %v645 = vlaneseq
        %v646 = vshrl.u32 %v645, 7
        %v647 = vsub.s32 2, %v646
        %v648 = vrot.slane %v621, %v647
        %650 = vbcast.lane.b32.xlu0 %v648, 256
        %v651 = vpop.permute.xlu0 %650
        %s653 = sor.u32 256, 8
        %654 = vbcast.lane.b32.xlu0 %v648, %s653
        %v655 = vpop.permute.xlu0 %654
        %v656 = vlaneseq
        %v657 = vshrl.u32 %v656, 7
        %v658 = vsub.s32 3, %v657
        %v659 = vrot.slane %v621, %v658
        %661 = vbcast.lane.b32.xlu0 %v659, 256
        %v662 = vpop.permute.xlu0 %661
        %s664 = sor.u32 256, 8
        %665 = vbcast.lane.b32.xlu0 %v659, %s664
        %v666 = vpop.permute.xlu0 %665
        %v667 = vlaneseq
        %v668 = vshrl.u32 %v667, 7
        %v669 = vsub.s32 4, %v668
        %v670 = vrot.slane %v621, %v669
        %672 = vbcast.lane.b32.xlu0 %v670, 256
        %v673 = vpop.permute.xlu0 %672
        %s675 = sor.u32 256, 8
        %676 = vbcast.lane.b32.xlu0 %v670, %s675
        %v677 = vpop.permute.xlu0 %676
        %v678 = vlaneseq
        %v679 = vshrl.u32 %v678, 7
        %v680 = vsub.s32 5, %v679
        %v681 = vrot.slane %v621, %v680
        %683 = vbcast.lane.b32.xlu0 %v681, 256
        %v684 = vpop.permute.xlu0 %683
        %s686 = sor.u32 256, 8
        %687 = vbcast.lane.b32.xlu0 %v681, %s686
        %v688 = vpop.permute.xlu0 %687
        %v689 = vlaneseq
        %v690 = vshrl.u32 %v689, 7
        %v691 = vsub.s32 6, %v690
        %v692 = vrot.slane %v621, %v691
        %694 = vbcast.lane.b32.xlu0 %v692, 256
        %v695 = vpop.permute.xlu0 %694
        %s697 = sor.u32 256, 8
        %698 = vbcast.lane.b32.xlu0 %v692, %s697
        %v699 = vpop.permute.xlu0 %698
        %v700 = vlaneseq
        %v701 = vshrl.u32 %v700, 7
        %v702 = vsub.s32 7, %v701
        %v703 = vrot.slane %v621, %v702
        %705 = vbcast.lane.b32.xlu0 %v703, 256
        %v706 = vpop.permute.xlu0 %705
        %s708 = sor.u32 256, 8
        %709 = vbcast.lane.b32.xlu0 %v703, %s708
        %v710 = vpop.permute.xlu0 %709
        %v711 = vlaneseq
        %v712 = vand.u32 %v711, 127
        %vm713 = vcmp.eq.s32.totalorder %v629, %v712
        %vm714 = vcmp.eq.s32.totalorder %v633, %v712
        %vm715 = vcmp.eq.s32.totalorder %v640, %v712
        %vm716 = vcmp.eq.s32.totalorder %v644, %v712
        %vm717 = vcmp.eq.s32.totalorder %v651, %v712
        %vm718 = vcmp.eq.s32.totalorder %v655, %v712
        %vm719 = vcmp.eq.s32.totalorder %v662, %v712
        %vm720 = vcmp.eq.s32.totalorder %v666, %v712
        %vm721 = vcmp.eq.s32.totalorder %v673, %v712
        %vm722 = vcmp.eq.s32.totalorder %v677, %v712
        %vm723 = vcmp.eq.s32.totalorder %v684, %v712
        %vm724 = vcmp.eq.s32.totalorder %v688, %v712
        %vm725 = vcmp.eq.s32.totalorder %v695, %v712
        %vm726 = vcmp.eq.s32.totalorder %v699, %v712
        %vm727 = vcmp.eq.s32.totalorder %v706, %v712
        %vm728 = vcmp.eq.s32.totalorder %v710, %v712
        %v729 = vlaneseq
        %v730 = vshrl.u32 %v729, 7
        %v731 = vsub.s32 0, %v730
        %v732 = vrot.slane %v622, %v731
        %734 = vbcast.lane.b32.xlu0 %v732, 256
        %v735 = vpop.permute.xlu0 %734
        %s737 = sor.u32 256, 8
        %738 = vbcast.lane.b32.xlu0 %v732, %s737
        %v739 = vpop.permute.xlu0 %738
        %v740 = vlaneseq
        %v741 = vshrl.u32 %v740, 7
        %v742 = vsub.s32 1, %v741
        %v743 = vrot.slane %v622, %v742
        %745 = vbcast.lane.b32.xlu0 %v743, 256
        %v746 = vpop.permute.xlu0 %745
        %s748 = sor.u32 256, 8
        %749 = vbcast.lane.b32.xlu0 %v743, %s748
        %v750 = vpop.permute.xlu0 %749
        %v751 = vlaneseq
        %v752 = vshrl.u32 %v751, 7
        %v753 = vsub.s32 2, %v752
        %v754 = vrot.slane %v622, %v753
        %756 = vbcast.lane.b32.xlu0 %v754, 256
        %v757 = vpop.permute.xlu0 %756
        %s759 = sor.u32 256, 8
        %760 = vbcast.lane.b32.xlu0 %v754, %s759
        %v761 = vpop.permute.xlu0 %760
        %v762 = vlaneseq
        %v763 = vshrl.u32 %v762, 7
        %v764 = vsub.s32 3, %v763
        %v765 = vrot.slane %v622, %v764
        %767 = vbcast.lane.b32.xlu0 %v765, 256
        %v768 = vpop.permute.xlu0 %767
        %s770 = sor.u32 256, 8
        %771 = vbcast.lane.b32.xlu0 %v765, %s770
        %v772 = vpop.permute.xlu0 %771
        %v773 = vlaneseq
        %v774 = vshrl.u32 %v773, 7
        %v775 = vsub.s32 4, %v774
        %v776 = vrot.slane %v622, %v775
        %778 = vbcast.lane.b32.xlu0 %v776, 256
        %v779 = vpop.permute.xlu0 %778
        %s781 = sor.u32 256, 8
        %782 = vbcast.lane.b32.xlu0 %v776, %s781
        %v783 = vpop.permute.xlu0 %782
        %v784 = vlaneseq
        %v785 = vshrl.u32 %v784, 7
        %v786 = vsub.s32 5, %v785
        %v787 = vrot.slane %v622, %v786
        %789 = vbcast.lane.b32.xlu0 %v787, 256
        %v790 = vpop.permute.xlu0 %789
        %s792 = sor.u32 256, 8
        %793 = vbcast.lane.b32.xlu0 %v787, %s792
        %v794 = vpop.permute.xlu0 %793
        %v795 = vlaneseq
        %v796 = vshrl.u32 %v795, 7
        %v797 = vsub.s32 6, %v796
        %v798 = vrot.slane %v622, %v797
        %800 = vbcast.lane.b32.xlu0 %v798, 256
        %v801 = vpop.permute.xlu0 %800
        %s803 = sor.u32 256, 8
        %804 = vbcast.lane.b32.xlu0 %v798, %s803
        %v805 = vpop.permute.xlu0 %804
        %v806 = vlaneseq
        %v807 = vshrl.u32 %v806, 7
        %v808 = vsub.s32 7, %v807
        %v809 = vrot.slane %v622, %v808
        %811 = vbcast.lane.b32.xlu0 %v809, 256
        %v812 = vpop.permute.xlu0 %811
        %s814 = sor.u32 256, 8
        %815 = vbcast.lane.b32.xlu0 %v809, %s814
        %v816 = vpop.permute.xlu0 %815
        %v817 = vsel %vm713, %v735, 0.0
        %v818 = vsel %vm714, %v739, 0.0
        %v819 = vsel %vm715, %v746, 0.0
        %v820 = vsel %vm716, %v750, 0.0
        %v821 = vsel %vm717, %v757, 0.0
        %v822 = vsel %vm718, %v761, 0.0
        %v823 = vsel %vm719, %v768, 0.0
        %v824 = vsel %vm720, %v772, 0.0
        %v825 = vsel %vm721, %v779, 0.0
        %v826 = vsel %vm722, %v783, 0.0
        %v827 = vsel %vm723, %v790, 0.0
        %v828 = vsel %vm724, %v794, 0.0
        %v829 = vsel %vm725, %v801, 0.0
        %v830 = vsel %vm726, %v805, 0.0
        %v831 = vsel %vm727, %v812, 0.0
        %v832 = vsel %vm728, %v816, 0.0
        %v833 = vadd.f32 %v817, %v818
        %v834 = vrot.slane %v833, 4
        %v835 = vadd.f32 %v833, %v834
        %v836 = vrot.slane %v835, 2
        %v837 = vadd.f32 %v835, %v836
        %v838 = vrot.slane %v837, 1
        %v839 = vadd.f32 %v837, %v838
        %v840 = vadd.f32 %v819, %v820
        %v841 = vrot.slane %v840, 4
        %v842 = vadd.f32 %v840, %v841
        %v843 = vrot.slane %v842, 2
        %v844 = vadd.f32 %v842, %v843
        %v845 = vrot.slane %v844, 1
        %v846 = vadd.f32 %v844, %v845
        %v847 = vadd.f32 %v821, %v822
        %v848 = vrot.slane %v847, 4
        %v849 = vadd.f32 %v847, %v848
        %v850 = vrot.slane %v849, 2
        %v851 = vadd.f32 %v849, %v850
        %v852 = vrot.slane %v851, 1
        %v853 = vadd.f32 %v851, %v852
        %v854 = vadd.f32 %v823, %v824
        %v855 = vrot.slane %v854, 4
        %v856 = vadd.f32 %v854, %v855
        %v857 = vrot.slane %v856, 2
        %v858 = vadd.f32 %v856, %v857
        %v859 = vrot.slane %v858, 1
        %v860 = vadd.f32 %v858, %v859
        %v861 = vadd.f32 %v825, %v826
        %v862 = vrot.slane %v861, 4
        %v863 = vadd.f32 %v861, %v862
        %v864 = vrot.slane %v863, 2
        %v865 = vadd.f32 %v863, %v864
        %v866 = vrot.slane %v865, 1
        %v867 = vadd.f32 %v865, %v866
        %v868 = vadd.f32 %v827, %v828
        %v869 = vrot.slane %v868, 4
        %v870 = vadd.f32 %v868, %v869
        %v871 = vrot.slane %v870, 2
        %v872 = vadd.f32 %v870, %v871
        %v873 = vrot.slane %v872, 1
        %v874 = vadd.f32 %v872, %v873
        %v875 = vadd.f32 %v829, %v830
        %v876 = vrot.slane %v875, 4
        %v877 = vadd.f32 %v875, %v876
        %v878 = vrot.slane %v877, 2
        %v879 = vadd.f32 %v877, %v878
        %v880 = vrot.slane %v879, 1
        %v881 = vadd.f32 %v879, %v880
        %v882 = vadd.f32 %v831, %v832
        %v883 = vrot.slane %v882, 4
        %v884 = vadd.f32 %v882, %v883
        %v885 = vrot.slane %v884, 2
        %v886 = vadd.f32 %v884, %v885
        %v887 = vrot.slane %v886, 1
        %v888 = vadd.f32 %v886, %v887
        %v889 = vld [vmem:[#allocation3] sm:$0xff]
        %v890 = vld [vmem:[#allocation3 + $0x8] sm:$0xff]
        %v891 = vld [vmem:[#allocation3 + $0x10] sm:$0xff]
        %v892 = vld [vmem:[#allocation3 + $0x18] sm:$0xff]
        %v893 = vld [vmem:[#allocation3 + $0x20] sm:$0xff]
        %v894 = vld [vmem:[#allocation3 + $0x28] sm:$0xff]
        %v895 = vld [vmem:[#allocation3 + $0x30] sm:$0xff]
        %v896 = vld [vmem:[#allocation3 + $0x38] sm:$0xff]
        %v897 = vld [vmem:[#allocation3 + $0x40] sm:$0xff]
        %v898 = vld [vmem:[#allocation3 + $0x48] sm:$0xff]
        %v899 = vld [vmem:[#allocation3 + $0x50] sm:$0xff]
        %v900 = vld [vmem:[#allocation3 + $0x58] sm:$0xff]
        %v901 = vld [vmem:[#allocation3 + $0x60] sm:$0xff]
        %v902 = vld [vmem:[#allocation3 + $0x68] sm:$0xff]
        %v903 = vld [vmem:[#allocation3 + $0x70] sm:$0xff]
        %v904 = vld [vmem:[#allocation3 + $0x78] sm:$0xff]
        %vm913 = vcmask 1041409
        %v914 = vsel %vm913, %v846, %v839
        %vm915 = vcmask 1042434
        %v916 = vsel %vm915, %v853, %v914
        %vm917 = vcmask 1043459
        %v918 = vsel %vm917, %v860, %v916
        %vm919 = vcmask 1044484
        %v920 = vsel %vm919, %v867, %v918
        %vm921 = vcmask 1045509
        %v922 = vsel %vm921, %v874, %v920
        %vm923 = vcmask 1046534
        %v924 = vsel %vm923, %v881, %v922
        %vm925 = vcmask 1047559
        %v926 = vsel %vm925, %v888, %v924
        %928 = vmatprep.subr.mxu0 0.0
        %929 = vmatpush1.msra.mxu0 %v889
        %930 = vmatprep.subr.mxu0 0.0
        %931 = vmatpush1.msra.mxu0 %v890
        %932 = vmatprep.subr.mxu0 0.0
        %933 = vmatpush1.msra.mxu0 %v891
        %934 = vmatprep.subr.mxu0 0.0
        %935 = vmatpush1.msra.mxu0 %v892
        %936 = vmatprep.subr.mxu0 0.0
        %937 = vmatpush1.msra.mxu0 %v893
        %938 = vmatprep.subr.mxu0 0.0
        %939 = vmatpush1.msra.mxu0 %v894
        %940 = vmatprep.subr.mxu0 0.0
        %941 = vmatpush1.msra.mxu0 %v895
        %942 = vmatprep.subr.mxu0 0.0
        %943 = vmatpush1.msra.mxu0 %v896
        %944 = vmatprep.subr.mxu0 0.0
        %945 = vmatpush1.msra.mxu0 %v897
        %946 = vmatprep.subr.mxu0 0.0
        %947 = vmatpush1.msra.mxu0 %v898
        %948 = vmatprep.subr.mxu0 0.0
        %949 = vmatpush1.msra.mxu0 %v899
        %950 = vmatprep.subr.mxu0 0.0
        %951 = vmatpush1.msra.mxu0 %v900
        %952 = vmatprep.subr.mxu0 0.0
        %953 = vmatpush1.msra.mxu0 %v901
        %954 = vmatprep.subr.mxu0 0.0
        %955 = vmatpush1.msra.mxu0 %v902
        %956 = vmatprep.subr.mxu0 0.0
        %957 = vmatpush1.msra.mxu0 %v903
        %958 = vmatprep.subr.mxu0 0.0
        %959 = vmatpush1.msra.mxu0 %v904
        %960 = vmatprep.subr.mxu0 0.0
        %961 = vmatpush1.msra.mxu0 0.0
        %962 = vmatprep.subr.mxu0 0.0
        %963 = vmatpush1.msra.mxu0 0.0
        %964 = vmatprep.subr.mxu0 0.0
        %965 = vmatpush1.msra.mxu0 0.0
        %966 = vmatprep.subr.mxu0 0.0
        %967 = vmatpush1.msra.mxu0 0.0
        %968 = vmatprep.subr.mxu0 0.0
        %969 = vmatpush1.msra.mxu0 0.0
        %970 = vmatprep.subr.mxu0 0.0
        %971 = vmatpush1.msra.mxu0 0.0
        %972 = vmatprep.subr.mxu0 0.0
        %973 = vmatpush1.msra.mxu0 0.0
        %974 = vmatprep.subr.mxu0 0.0
        %975 = vmatpush1.msra.mxu0 0.0
        %976 = vmatprep.subr.mxu0 0.0
        %977 = vmatpush1.msra.mxu0 0.0
        %978 = vmatprep.subr.mxu0 0.0
        %979 = vmatpush1.msra.mxu0 0.0
        %980 = vmatprep.subr.mxu0 0.0
        %981 = vmatpush1.msra.mxu0 0.0
        %982 = vmatprep.subr.mxu0 0.0
        %983 = vmatpush1.msra.mxu0 0.0
        %984 = vmatprep.subr.mxu0 0.0
        %985 = vmatpush1.msra.mxu0 0.0
        %986 = vmatprep.subr.mxu0 0.0
        %987 = vmatpush1.msra.mxu0 0.0
        %988 = vmatprep.subr.mxu0 0.0
        %989 = vmatpush1.msra.mxu0 0.0
        %990 = vmatprep.subr.mxu0 0.0
        %991 = vmatpush1.msra.mxu0 0.0
        %992 = vmatprep.mubr.f32.mxu0 0.0
        %993 = vmatmul.mubr.f32.gmra.mrb[0].mxu0 %v926
        %v994 = vpop.f32.mrb[0].mxu0
        %v995 = vadd.f32 0.0, %v994
        %v996 = vpop.f32.mrb[0].mxu0
        %997 = vdwg.mxu0
        %vm998 = vcmask 130048
        %v999 = vsel %vm998, %v622, 0.0
        %1000 = vadd.xlane.f32.xlu0 %v999
        %v1001 = vpop.xlane.xlu0 %1000
        %v1002 = vmax.f32 %v1001, 1.0
        %v1003 = vrcp.pop %v1002
        %v1004 = vmul.f32 %v995, %v1003
        %v1005 = vpack.c.bf16 %v1004, %v1004
        %v1006 = vld [vmem:[#allocation5] sm:$0xf]
        %v1007 = vld [vmem:[#allocation5 + $0x4] sm:$0xf]
        %v1008 = vld [vmem:[#allocation5 + $0x8] sm:$0xf]
        %v1009 = vld [vmem:[#allocation5 + $0xc] sm:$0xf]
        %v1010 = vld [vmem:[#allocation5 + $0x10] sm:$0xf]
        %v1011 = vld [vmem:[#allocation5 + $0x14] sm:$0xf]
        %v1012 = vld [vmem:[#allocation5 + $0x18] sm:$0xf]
        %v1013 = vld [vmem:[#allocation5 + $0x1c] sm:$0xf]
        %v1014 = vld [vmem:[#allocation5 + $0x20] sm:$0xf]
        %v1015 = vld [vmem:[#allocation5 + $0x24] sm:$0xf]
        %v1016 = vld [vmem:[#allocation5 + $0x28] sm:$0xf]
        %v1017 = vld [vmem:[#allocation5 + $0x2c] sm:$0xf]
        %v1018 = vld [vmem:[#allocation5 + $0x30] sm:$0xf]
        %v1019 = vld [vmem:[#allocation5 + $0x34] sm:$0xf]
        %v1020 = vld [vmem:[#allocation5 + $0x38] sm:$0xf]
        %v1021 = vld [vmem:[#allocation5 + $0x3c] sm:$0xf]
        %v1022 = vld [vmem:[%s4] sm:$0x1]
        %v1024 = vlaneseq
        %v1025 = vshrl.u32 %v1024, 7
        %v1026 = vsub.s32 0, %v1025
        %v1027 = vrot.slane %v1022, %v1026
        %v1045 = vunpack.c.l.b16 %v1006
        %v1046 = vunpack.c.l.b16 %v1007
        %v1047 = vunpack.c.l.b16 %v1008
        %v1048 = vunpack.c.l.b16 %v1009
        %v1049 = vunpack.c.l.b16 %v1010
        %v1050 = vunpack.c.l.b16 %v1011
        %v1051 = vunpack.c.l.b16 %v1012
        %v1052 = vunpack.c.l.b16 %v1013
        %v1053 = vunpack.c.l.b16 %v1014
        %v1054 = vunpack.c.l.b16 %v1015
        %v1055 = vunpack.c.l.b16 %v1016
        %v1056 = vunpack.c.l.b16 %v1017
        %v1057 = vunpack.c.l.b16 %v1018
        %v1058 = vunpack.c.l.b16 %v1019
        %v1059 = vunpack.c.l.b16 %v1020
        %v1060 = vunpack.c.l.b16 %v1021
        %v1061 = vpack.c.b16 %v1046, %v1045
        %v1062 = vpack.c.b16 %v1048, %v1047
        %v1063 = vpack.c.b16 %v1050, %v1049
        %v1064 = vpack.c.b16 %v1052, %v1051
        %v1065 = vpack.c.b16 %v1054, %v1053
        %v1066 = vpack.c.b16 %v1056, %v1055
        %v1067 = vpack.c.b16 %v1058, %v1057
        %v1068 = vpack.c.b16 %v1060, %v1059
        %1077 = vmatprep.subr.bf16.mxu0 0
        %1078 = vmatpush1.bf16.msra.mxu0 %v1061
        %1079 = vmatprep.subr.bf16.mxu0 0
        %1080 = vmatpush1.bf16.msra.mxu0 %v1062
        %1081 = vmatprep.subr.bf16.mxu0 0
        %1082 = vmatpush1.bf16.msra.mxu0 %v1063
        %1083 = vmatprep.subr.bf16.mxu0 0
        %1084 = vmatpush1.bf16.msra.mxu0 %v1064
        %1085 = vmatprep.subr.bf16.mxu0 0
        %1086 = vmatpush1.bf16.msra.mxu0 %v1065
        %1087 = vmatprep.subr.bf16.mxu0 0
        %1088 = vmatpush1.bf16.msra.mxu0 %v1066
        %1089 = vmatprep.subr.bf16.mxu0 0
        %1090 = vmatpush1.bf16.msra.mxu0 %v1067
        %1091 = vmatprep.subr.bf16.mxu0 0
        %1092 = vmatpush1.bf16.msra.mxu0 %v1068
        %1093 = vmatprep.subr.bf16.mxu0 0
        %1094 = vmatpush1.bf16.msra.mxu0 0
        %1095 = vmatprep.subr.bf16.mxu0 0
        %1096 = vmatpush1.bf16.msra.mxu0 0
        %1097 = vmatprep.subr.bf16.mxu0 0
        %1098 = vmatpush1.bf16.msra.mxu0 0
        %1099 = vmatprep.subr.bf16.mxu0 0
        %1100 = vmatpush1.bf16.msra.mxu0 0
        %1101 = vmatprep.subr.bf16.mxu0 0
        %1102 = vmatpush1.bf16.msra.mxu0 0
        %1103 = vmatprep.subr.bf16.mxu0 0
        %1104 = vmatpush1.bf16.msra.mxu0 0
        %1105 = vmatprep.subr.bf16.mxu0 0
        %1106 = vmatpush1.bf16.msra.mxu0 0
        %1107 = vmatprep.subr.bf16.mxu0 0
        %1108 = vmatpush1.bf16.msra.mxu0 0
        %1109 = vmatprep.mubr.bf16.mxu0 0
        %1110 = vmatmul.mubr.bf16.gmra.mrb[0].mxu0 %v1005
        %v1111 = vpop.f32.mrb[0].mxu0
        %v1112 = vadd.f32 %v1027, %v1111
        %v1113 = vpop.f32.mrb[0].mxu0
        %v1114 = vpop.f32.mrb[0].mxu0
        %v1115 = vpop.f32.mrb[0].mxu0
        %1116 = vdwg.mxu0
        %v1117 = vtanh.pop %v1112
        %v1118 = vpack.c.bf16 %v1117, %v1117
        %v1119 = vld [vmem:[#allocation7] sm:$0xf]
        %v1120 = vld [vmem:[#allocation7 + $0x4] sm:$0xf]
        %v1121 = vld [vmem:[#allocation7 + $0x8] sm:$0xf]
        %v1122 = vld [vmem:[#allocation7 + $0xc] sm:$0xf]
        %v1123 = vld [vmem:[#allocation7 + $0x10] sm:$0xf]
        %v1124 = vld [vmem:[#allocation7 + $0x14] sm:$0xf]
        %v1125 = vld [vmem:[#allocation7 + $0x18] sm:$0xf]
        %v1126 = vld [vmem:[#allocation7 + $0x1c] sm:$0xf]
        %v1127 = vld [vmem:[#allocation7 + $0x20] sm:$0xf]
        %v1128 = vld [vmem:[#allocation7 + $0x24] sm:$0xf]
        %v1129 = vld [vmem:[#allocation7 + $0x28] sm:$0xf]
        %v1130 = vld [vmem:[#allocation7 + $0x2c] sm:$0xf]
        %v1131 = vld [vmem:[#allocation7 + $0x30] sm:$0xf]
        %v1132 = vld [vmem:[#allocation7 + $0x34] sm:$0xf]
        %v1133 = vld [vmem:[#allocation7 + $0x38] sm:$0xf]
        %v1134 = vld [vmem:[#allocation7 + $0x3c] sm:$0xf]
        %v1135 = vld [vmem:[%s6] sm:$0x1]
        %v1137 = vlaneseq
        %v1138 = vshrl.u32 %v1137, 7
        %v1139 = vsub.s32 0, %v1138
        %v1140 = vrot.slane %v1135, %v1139
        %v1158 = vunpack.c.l.b16 %v1119
        %v1159 = vunpack.c.l.b16 %v1120
        %v1160 = vunpack.c.l.b16 %v1121
        %v1161 = vunpack.c.l.b16 %v1122
        %v1162 = vunpack.c.l.b16 %v1123
        %v1163 = vunpack.c.l.b16 %v1124
        %v1164 = vunpack.c.l.b16 %v1125
        %v1165 = vunpack.c.l.b16 %v1126
        %v1166 = vunpack.c.l.b16 %v1127
        %v1167 = vunpack.c.l.b16 %v1128
        %v1168 = vunpack.c.l.b16 %v1129
        %v1169 = vunpack.c.l.b16 %v1130
        %v1170 = vunpack.c.l.b16 %v1131
        %v1171 = vunpack.c.l.b16 %v1132
        %v1172 = vunpack.c.l.b16 %v1133
        %v1173 = vunpack.c.l.b16 %v1134
        %v1174 = vpack.c.b16 %v1159, %v1158
        %v1175 = vpack.c.b16 %v1161, %v1160
        %v1176 = vpack.c.b16 %v1163, %v1162
        %v1177 = vpack.c.b16 %v1165, %v1164
        %v1178 = vpack.c.b16 %v1167, %v1166
        %v1179 = vpack.c.b16 %v1169, %v1168
        %v1180 = vpack.c.b16 %v1171, %v1170
        %v1181 = vpack.c.b16 %v1173, %v1172
        %1190 = vmatprep.subr.bf16.mxu0 0
        %1191 = vmatpush1.bf16.msra.mxu0 %v1174
        %1192 = vmatprep.subr.bf16.mxu0 0
        %1193 = vmatpush1.bf16.msra.mxu0 %v1175
        %1194 = vmatprep.subr.bf16.mxu0 0
        %1195 = vmatpush1.bf16.msra.mxu0 %v1176
        %1196 = vmatprep.subr.bf16.mxu0 0
        %1197 = vmatpush1.bf16.msra.mxu0 %v1177
        %1198 = vmatprep.subr.bf16.mxu0 0
        %1199 = vmatpush1.bf16.msra.mxu0 %v1178
        %1200 = vmatprep.subr.bf16.mxu0 0
        %1201 = vmatpush1.bf16.msra.mxu0 %v1179
        %1202 = vmatprep.subr.bf16.mxu0 0
        %1203 = vmatpush1.bf16.msra.mxu0 %v1180
        %1204 = vmatprep.subr.bf16.mxu0 0
        %1205 = vmatpush1.bf16.msra.mxu0 %v1181
        %1206 = vmatprep.subr.bf16.mxu0 0
        %1207 = vmatpush1.bf16.msra.mxu0 0
        %1208 = vmatprep.subr.bf16.mxu0 0
        %1209 = vmatpush1.bf16.msra.mxu0 0
        %1210 = vmatprep.subr.bf16.mxu0 0
        %1211 = vmatpush1.bf16.msra.mxu0 0
        %1212 = vmatprep.subr.bf16.mxu0 0
        %1213 = vmatpush1.bf16.msra.mxu0 0
        %1214 = vmatprep.subr.bf16.mxu0 0
        %1215 = vmatpush1.bf16.msra.mxu0 0
        %1216 = vmatprep.subr.bf16.mxu0 0
        %1217 = vmatpush1.bf16.msra.mxu0 0
        %1218 = vmatprep.subr.bf16.mxu0 0
        %1219 = vmatpush1.bf16.msra.mxu0 0
        %1220 = vmatprep.subr.bf16.mxu0 0
        %1221 = vmatpush1.bf16.msra.mxu0 0
        %1222 = vmatprep.mubr.bf16.mxu0 0
        %1223 = vmatmul.mubr.bf16.gmra.mrb[0].mxu0 %v1118
        %v1224 = vpop.f32.mrb[0].mxu0
        %v1225 = vadd.f32 %v1140, %v1224
        %v1226 = vpop.f32.mrb[0].mxu0
        %v1227 = vpop.f32.mrb[0].mxu0
        %v1228 = vpop.f32.mrb[0].mxu0
        %1229 = vdwg.mxu0
        %v1230 = vmul.f32 %v1225, %v1225
        %v1231 = vmul.f32 %v1225, %v1230
        %v1232 = vmul.f32 %v1231, 0.044715
        %v1233 = vadd.f32 %v1225, %v1232
        %v1234 = vmul.f32 %v1233, 0.7978846
        %v1235 = vtanh.pop %v1234
        %v1236 = vadd.f32 %v1235, 1.0
        %v1237 = vmul.f32 %v1236, 0.5
        %v1238 = vmul.f32 %v1225, %v1237
        %v1239 = vpack.c.bf16 %v1238, %v1238
        %v1240 = vld [vmem:[#allocation8] sm:$0xf]
        %v1241 = vld [vmem:[#allocation8 + $0x4] sm:$0xf]
        %v1242 = vld [vmem:[#allocation8 + $0x8] sm:$0xf]
        %v1243 = vld [vmem:[#allocation8 + $0xc] sm:$0xf]
        %v1244 = vld [vmem:[#allocation8 + $0x10] sm:$0xf]
        %v1245 = vld [vmem:[#allocation8 + $0x14] sm:$0xf]
        %v1246 = vld [vmem:[#allocation8 + $0x18] sm:$0xf]
        %v1247 = vld [vmem:[#allocation8 + $0x1c] sm:$0xf]
        %v1248 = vld [vmem:[#allocation8 + $0x20] sm:$0xf]
        %v1249 = vld [vmem:[#allocation8 + $0x24] sm:$0xf]
        %v1250 = vld [vmem:[#allocation8 + $0x28] sm:$0xf]
        %v1251 = vld [vmem:[#allocation8 + $0x2c] sm:$0xf]
        %v1252 = vld [vmem:[#allocation8 + $0x30] sm:$0xf]
        %v1253 = vld [vmem:[#allocation8 + $0x34] sm:$0xf]
        %v1254 = vld [vmem:[#allocation8 + $0x38] sm:$0xf]
        %v1255 = vld [vmem:[#allocation8 + $0x3c] sm:$0xf]
        %v1256 = vld [vmem:[#allocation10] sm:$0x1]
        %v1258 = vlaneseq
        %v1259 = vshrl.u32 %v1258, 7
        %v1260 = vsub.s32 0, %v1259
        %v1261 = vrot.slane %v1256, %v1260
        %v1279 = vunpack.c.l.b16 %v1240
        %v1280 = vunpack.c.l.b16 %v1241
        %v1281 = vunpack.c.l.b16 %v1242
        %v1282 = vunpack.c.l.b16 %v1243
        %v1283 = vunpack.c.l.b16 %v1244
        %v1284 = vunpack.c.l.b16 %v1245
        %v1285 = vunpack.c.l.b16 %v1246
        %v1286 = vunpack.c.l.b16 %v1247
        %v1287 = vunpack.c.l.b16 %v1248
        %v1288 = vunpack.c.l.b16 %v1249
        %v1289 = vunpack.c.l.b16 %v1250
        %v1290 = vunpack.c.l.b16 %v1251
        %v1291 = vunpack.c.l.b16 %v1252
        %v1292 = vunpack.c.l.b16 %v1253
        %v1293 = vunpack.c.l.b16 %v1254
        %v1294 = vunpack.c.l.b16 %v1255
        %v1295 = vpack.c.b16 %v1280, %v1279
        %v1296 = vpack.c.b16 %v1282, %v1281
        %v1297 = vpack.c.b16 %v1284, %v1283
        %v1298 = vpack.c.b16 %v1286, %v1285
        %v1299 = vpack.c.b16 %v1288, %v1287
        %v1300 = vpack.c.b16 %v1290, %v1289
        %v1301 = vpack.c.b16 %v1292, %v1291
        %v1302 = vpack.c.b16 %v1294, %v1293
        %1311 = vmatprep.subr.bf16.mxu0 0
        %1312 = vmatpush1.bf16.msra.mxu0 %v1295
        %1313 = vmatprep.subr.bf16.mxu0 0
        %1314 = vmatpush1.bf16.msra.mxu0 %v1296
        %1315 = vmatprep.subr.bf16.mxu0 0
        %1316 = vmatpush1.bf16.msra.mxu0 %v1297
        %1317 = vmatprep.subr.bf16.mxu0 0
        %1318 = vmatpush1.bf16.msra.mxu0 %v1298
        %1319 = vmatprep.subr.bf16.mxu0 0
        %1320 = vmatpush1.bf16.msra.mxu0 %v1299
        %1321 = vmatprep.subr.bf16.mxu0 0
        %1322 = vmatpush1.bf16.msra.mxu0 %v1300
        %1323 = vmatprep.subr.bf16.mxu0 0
        %1324 = vmatpush1.bf16.msra.mxu0 %v1301
        %1325 = vmatprep.subr.bf16.mxu0 0
        %1326 = vmatpush1.bf16.msra.mxu0 %v1302
        %1327 = vmatprep.subr.bf16.mxu0 0
        %1328 = vmatpush1.bf16.msra.mxu0 0
        %1329 = vmatprep.subr.bf16.mxu0 0
        %1330 = vmatpush1.bf16.msra.mxu0 0
        %1331 = vmatprep.subr.bf16.mxu0 0
        %1332 = vmatpush1.bf16.msra.mxu0 0
        %1333 = vmatprep.subr.bf16.mxu0 0
        %1334 = vmatpush1.bf16.msra.mxu0 0
        %1335 = vmatprep.subr.bf16.mxu0 0
        %1336 = vmatpush1.bf16.msra.mxu0 0
        %1337 = vmatprep.subr.bf16.mxu0 0
        %1338 = vmatpush1.bf16.msra.mxu0 0
        %1339 = vmatprep.subr.bf16.mxu0 0
        %1340 = vmatpush1.bf16.msra.mxu0 0
        %1341 = vmatprep.subr.bf16.mxu0 0
        %1342 = vmatpush1.bf16.msra.mxu0 0
        %1343 = vmatprep.mubr.bf16.mxu0 0
        %1344 = vmatmul.mubr.bf16.gmra.mrb[0].mxu0 %v1239
        %v1345 = vpop.f32.mrb[0].mxu0
        %v1346 = vadd.f32 %v1261, %v1345
        %v1347 = vpop.f32.mrb[0].mxu0
        %v1348 = vpop.f32.mrb[0].mxu0
        %v1349 = vpop.f32.mrb[0].mxu0
        %1350 = vdwg.mxu0
        %v1351 = vadd.f32 %v1346, %v1225
        %1352 = vadd.xlane.f32.xlu0 %v1351
        %v1353 = vpop.xlane.xlu0 %1352
        %v1354 = vrcp.pop 128.0
        %v1355 = vmul.f32 %v1353, %v1354
        %v1356 = vsub.f32 %v1351, %v1355
        %v1357 = vmul.f32 %v1356, %v1356
        %1358 = vadd.xlane.f32.xlu0 %v1357
        %v1359 = vpop.xlane.xlu0 %1358
        %v1360 = vmul.f32 %v1359, %v1354
        %v1361 = vadd.f32 %v1360, 1e-05
        %v1362 = vrsqrt.pop %v1361
        %v1363 = vmul.f32 %v1356, %v1362
        %v1364 = vld [vmem:[#allocation11] sm:$0x1]
        %v1366 = vlaneseq
        %v1367 = vshrl.u32 %v1366, 7
        %v1368 = vsub.s32 0, %v1367
        %v1369 = vrot.slane %v1364, %v1368
        %v1371 = vmul.f32 %v1363, %v1369
        %v1372 = vld [vmem:[#allocation13] sm:$0x1]
        %v1374 = vlaneseq
        %v1375 = vshrl.u32 %v1374, 7
        %v1376 = vsub.s32 0, %v1375
        %v1377 = vrot.slane %v1372, %v1376
        %v1379 = vadd.f32 %v1371, %v1377
        %v1380 = vpack.c.bf16 %v1379, %v1379
        %v1381 = vld [vmem:[#allocation14] sm:$0xf]
        %v1382 = vld [vmem:[#allocation14 + $0x4] sm:$0xf]
        %v1383 = vld [vmem:[#allocation14 + $0x8] sm:$0xf]
        %v1384 = vld [vmem:[#allocation14 + $0xc] sm:$0xf]
        %v1385 = vld [vmem:[#allocation14 + $0x10] sm:$0xf]
        %v1386 = vld [vmem:[#allocation14 + $0x14] sm:$0xf]
        %v1387 = vld [vmem:[#allocation14 + $0x18] sm:$0xf]
        %v1388 = vld [vmem:[#allocation14 + $0x1c] sm:$0xf]
        %v1389 = vld [vmem:[#allocation14 + $0x20] sm:$0xf]
        %v1390 = vld [vmem:[#allocation14 + $0x24] sm:$0xf]
        %v1391 = vld [vmem:[#allocation14 + $0x28] sm:$0xf]
        %v1392 = vld [vmem:[#allocation14 + $0x2c] sm:$0xf]
        %v1393 = vld [vmem:[#allocation14 + $0x30] sm:$0xf]
        %v1394 = vld [vmem:[#allocation14 + $0x34] sm:$0xf]
        %v1395 = vld [vmem:[#allocation14 + $0x38] sm:$0xf]
        %v1396 = vld [vmem:[#allocation14 + $0x3c] sm:$0xf]
        %v1397 = vld [vmem:[%s12] sm:$0x1]
        %v1399 = vlaneseq
        %v1400 = vshrl.u32 %v1399, 7
        %v1401 = vsub.s32 0, %v1400
        %v1402 = vrot.slane %v1397, %v1401
        %v1420 = vunpack.c.l.b16 %v1381
        %v1421 = vunpack.c.l.b16 %v1382
        %v1422 = vunpack.c.l.b16 %v1383
        %v1423 = vunpack.c.l.b16 %v1384
        %v1424 = vunpack.c.l.b16 %v1385
        %v1425 = vunpack.c.l.b16 %v1386
        %v1426 = vunpack.c.l.b16 %v1387
        %v1427 = vunpack.c.l.b16 %v1388
        %v1428 = vunpack.c.l.b16 %v1389
        %v1429 = vunpack.c.l.b16 %v1390
        %v1430 = vunpack.c.l.b16 %v1391
        %v1431 = vunpack.c.l.b16 %v1392
        %v1432 = vunpack.c.l.b16 %v1393
        %v1433 = vunpack.c.l.b16 %v1394
        %v1434 = vunpack.c.l.b16 %v1395
        %v1435 = vunpack.c.l.b16 %v1396
        %v1436 = vpack.c.b16 %v1421, %v1420
        %v1437 = vpack.c.b16 %v1423, %v1422
        %v1438 = vpack.c.b16 %v1425, %v1424
        %v1439 = vpack.c.b16 %v1427, %v1426
        %v1440 = vpack.c.b16 %v1429, %v1428
        %v1441 = vpack.c.b16 %v1431, %v1430
        %v1442 = vpack.c.b16 %v1433, %v1432
        %v1443 = vpack.c.b16 %v1435, %v1434
        %1452 = vmatprep.subr.bf16.mxu0 0
        %1453 = vmatpush1.bf16.msra.mxu0 %v1436
        %1454 = vmatprep.subr.bf16.mxu0 0
        %1455 = vmatpush1.bf16.msra.mxu0 %v1437
        %1456 = vmatprep.subr.bf16.mxu0 0
        %1457 = vmatpush1.bf16.msra.mxu0 %v1438
        %1458 = vmatprep.subr.bf16.mxu0 0
        %1459 = vmatpush1.bf16.msra.mxu0 %v1439
        %1460 = vmatprep.subr.bf16.mxu0 0
        %1461 = vmatpush1.bf16.msra.mxu0 %v1440
        %1462 = vmatprep.subr.bf16.mxu0 0
        %1463 = vmatpush1.bf16.msra.mxu0 %v1441
        %1464 = vmatprep.subr.bf16.mxu0 0
        %1465 = vmatpush1.bf16.msra.mxu0 %v1442
        %1466 = vmatprep.subr.bf16.mxu0 0
        %1467 = vmatpush1.bf16.msra.mxu0 %v1443
        %1468 = vmatprep.subr.bf16.mxu0 0
        %1469 = vmatpush1.bf16.msra.mxu0 0
        %1470 = vmatprep.subr.bf16.mxu0 0
        %1471 = vmatpush1.bf16.msra.mxu0 0
        %1472 = vmatprep.subr.bf16.mxu0 0
        %1473 = vmatpush1.bf16.msra.mxu0 0
        %1474 = vmatprep.subr.bf16.mxu0 0
        %1475 = vmatpush1.bf16.msra.mxu0 0
        %1476 = vmatprep.subr.bf16.mxu0 0
        %1477 = vmatpush1.bf16.msra.mxu0 0
        %1478 = vmatprep.subr.bf16.mxu0 0
        %1479 = vmatpush1.bf16.msra.mxu0 0
        %1480 = vmatprep.subr.bf16.mxu0 0
        %1481 = vmatpush1.bf16.msra.mxu0 0
        %1482 = vmatprep.subr.bf16.mxu0 0
        %1483 = vmatpush1.bf16.msra.mxu0 0
        %1484 = vmatprep.mubr.bf16.mxu0 0
        %1485 = vmatmul.mubr.bf16.gmra.mrb[0].mxu0 %v1380
        %v1486 = vpop.f32.mrb[0].mxu0
        %v1487 = vadd.f32 %v1402, %v1486
        %v1488 = vpop.f32.mrb[0].mxu0
        %v1489 = vpop.f32.mrb[0].mxu0
        %v1490 = vpop.f32.mrb[0].mxu0
        %1491 = vdwg.mxu0
        %v1492 = vmax.f32 %v1487, 0.0
        %v1493 = vld [vmem:[%s13] sm:$0x1]
        %v1495 = vlaneseq
        %v1496 = vshrl.u32 %v1495, 7
        %v1497 = vsub.s32 0, %v1496
        %v1498 = vrot.slane %v1493, %v1497
        %v1500 = vmul.f32 %v1492, %v1498
        %1501 = vadd.xlane.f32.xlu0 %v1500
        %v1502 = vpop.xlane.xlu0 %1501
        %v1503 = vld [vmem:[#allocation2] sm:$0x1]
        %v1505 = vlaneseq
        %v1506 = vshrl.u32 %v1505, 7
        %v1507 = vsub.s32 0, %v1506
        %v1508 = vrot.slane %v1503, %v1507
        %v1510 = vadd.f32 %v1502, %v1508
        %vm1511 = vcmask 7168
        %1512 = vst.msk [vmem:[%s619] sm:$0xff] %vm1511, %v1510
        %p1513 = scmp.lt.s32.totalorder %s33, 1
        %s1514 = scalar_select %p1513, %s33, 1
        %s1515 = smul.addr %s1514, 8
        %s1516 = scalar_lea.vmem %s15, %s1515
        // Predicated region
        $region113: #{regression_model_forward.1} parent=79 // pred_check
          %p1517 = pneg %p376
        $region114: #{regression_model_forward.1} parent=79 // pred_check_branch
          %1519 = sbr.rel (%p1517) target = $region116
        $region115: #{regression_model_forward.1} parent=79 // pred_region
          _
        $region116: #{regression_model_forward.1} parent=79 // pred_fallthru
          _
      $region80: #{regression_model_forward.1} parent=5 // pred_fallthru
        _
      %p1520 = scmp.le.s32.totalorder 2, %s28
      // Predicated region
      $region117: #{regression_model_forward.1} parent=5 // pred_check
        %p1521 = pneg %p1520
      $region118: #{regression_model_forward.1} parent=5 // pred_check_branch
        %1523 = sbr.rel (%p1521) target = $region120
      $region119: #{regression_model_forward.1} parent=5 // pred_region
        %s1524 = ssub.s32 %s28, 2
        // Predicated region
        $region121: #{regression_model_forward.1} parent=119 // pred_check
          %p1525 = pneg %p382
        $region122: #{regression_model_forward.1} parent=119 // pred_check_branch
          %1527 = sbr.rel (%p1525) target = $region124
        $region123: #{regression_model_forward.1} parent=119 // pred_region
          %p1528 = scmp.lt.s32.totalorder %s34, 1
          %s1529 = scalar_select %p1528, %s34, 1
          %s1530 = smul.addr %s1529, 8
          %s1531 = scalar_lea.vmem %s15, %s1530
        $region124: #{regression_model_forward.1} parent=119 // pred_fallthru
          _
      $region120: #{regression_model_forward.1} parent=5 // pred_fallthru
        _
    $region6: #{regression_model_forward.1} parent=1 // loop_footer
      %s32 = sadd.s32 1, %s28
    $region7: #{regression_model_forward.1} parent=1 // loop_footer_branch
      %27 = sbr.rel target = $region3
    $region8: #{regression_model_forward.1} parent=1 // loop_exit
      _
    %1532 = vsyncpa [#allocation4], 1
    %s1533 = scalar_lea.sflag [#allocation4], 1
    %1534 = vsyncpa %s1533, 1
    %1535 = vsyncpa [#allocation6], 1
    %1536 = vsyncpa [#allocation9], 1
    %1537 = vsyncpa [#allocation12], 1
    %1538 = vsyncpa [#allocation15], 1

</llo_original>
